<compile_context>
chip_gen: v7x
topology: tpu7x:2x2x1
jax: 0.10.0
libtpu: 0.0.40
codegen_flags: <defaults>
</compile_context>

<pallas_src>
import functools

import jax
import jax.numpy as jnp
import numpy as np
from jax.experimental import pallas as pl
from jax.experimental.pallas import tpu as pltpu


# --------------------------- kernel 1: qkv projection ---------------------------
def _qkv_proj_kernel(x_ref, w_ref, o_ref):
    # x_ref: (1, tq, C) bf16 ; w_ref: (C, 3C) bf16 ; o_ref: (1, tq, 3C) bf16
    o_ref[0] = jnp.dot(
        x_ref[0], w_ref[...], preferred_element_type=jnp.float32
    ).astype(o_ref.dtype)


# ---------------- kernel 2: flash MHSA + fused gates + output projection ----------------
def _flash_fused_kernel(
    q_ref,    # (1, H, tq, hd) bf16   (attention scale folded into q weight columns)
    k_ref,    # (1, H, tk, hd) bf16
    v_ref,    # (1, H, tk, hd) bf16   (fusion weight w0 folded into v weight columns)
    x_ref,    # (1, tq, C)     bf16
    ch_ref,   # (1, 1, C)      f32    w1 * sigmoid(channel-attention MLP)
    sp_ref,   # (1, tq, 1)     f32    w2 * sigmoid(spatial 7-tap conv)
    pwh_ref,  # (H, hd, C)     bf16   proj weight, head-major row blocks
    pwf_ref,  # (C, C)         bf16   proj weight, flat
    pb_ref,   # (1, C)         f32    proj bias
    o_ref,    # (1, tq, C)     output tile
    m_sc,     # (H, tq, 1)  f32 scratch: running row max
    l_sc,     # (H, tq, 1)  f32 scratch: running denominator
    acc_sc,   # (H, tq, hd) f32 scratch: running numerator
):
    ki = pl.program_id(2)

    @pl.when(ki == 0)
    def _():
        m_sc[...] = jnp.full(m_sc.shape, -jnp.inf, jnp.float32)
        l_sc[...] = jnp.zeros(l_sc.shape, jnp.float32)
        acc_sc[...] = jnp.zeros(acc_sc.shape, jnp.float32)

    q = q_ref[0]                                      # (H, tq, hd) bf16
    k = k_ref[0]                                      # (H, tk, hd) bf16
    v = v_ref[0]                                      # (H, tk, hd) bf16

    # Online-softmax flash update; scores/probs live only at (H, tq, tk).
    s = jnp.einsum("hqd,hkd->hqk", q, k, preferred_element_type=jnp.float32)
    m_prev = m_sc[...]
    m_new = jnp.maximum(m_prev, jnp.max(s, axis=-1, keepdims=True))
    alpha = jnp.exp(m_prev - m_new)
    p = jnp.exp(s - m_new)
    l_sc[...] = alpha * l_sc[...] + jnp.sum(p, axis=-1, keepdims=True)
    acc_sc[...] = alpha * acc_sc[...] + jnp.einsum(
        "hqk,hkd->hqd", p.astype(jnp.bfloat16), v, preferred_element_type=jnp.float32)
    m_sc[...] = m_new

    @pl.when(ki == pl.num_programs(2) - 1)
    def _():
        # Normalize on the EUP and apply the output projection per head:
        #   mhsa @ W == sum_h mhsa_h @ W[h*hd:(h+1)*hd, :]   -> no in-kernel head concat.
        inv_l = pl.reciprocal(l_sc[...], approx=True)                    # (H, tq, 1)
        o_h = (acc_sc[...] * inv_l).astype(jnp.bfloat16)                 # (H, tq, hd)
        mhsa_proj = jnp.sum(
            jnp.einsum("hqd,hdc->hqc", o_h, pwh_ref[...],
                       preferred_element_type=jnp.float32),
            axis=0)                                                      # (tq, C)

        # Channel + spatial branches (gates precomputed; fusion w1/w2 already folded in).
        xt = x_ref[0].astype(jnp.float32)                                # (tq, C)
        gated = xt * (ch_ref[0] + sp_ref[0])                             # (tq, C)
        other_proj = jnp.dot(gated.astype(jnp.bfloat16), pwf_ref[...],
                             preferred_element_type=jnp.float32)         # (tq, C)

        o_ref[0] = (mhsa_proj + other_proj + pb_ref[...]).astype(o_ref.dtype)


# ----------------------------- sizing helpers ---------------------------------
def _flash_vmem_bytes(H, hd, C, tq, tk, out_bytes):
    bf16, f32 = 2, 4
    stream = 2 * (H * tq * hd * bf16            # q (double buffered)
                  + 2 * H * tk * hd * bf16      # k, v
                  + tq * C * bf16               # x
                  + C * f32 + tq * f32          # gates
                  + tq * C * out_bytes)         # out
    weights = H * hd * C * bf16 + C * C * bf16 + C * f32     # single-buffered
    scratch = H * tq * 2 * f32 + H * tq * hd * f32
    transient = (H * tq * tk * (f32 + bf16)     # s (f32) + p (bf16)
                 + H * tq * C * f32             # per-head projected outputs before head-sum
                 + 4 * tq * C * f32)            # fused / gated temporaries
    return stream + weights + scratch + transient


def _pick_token_tile(N, H, hd, C, out_bytes, vmem_budget):
    cands = [c for c in (512, 256, 128, 64, 32, 16, 8) if c <= N and N % c == 0]
    if not cands:
        cands = [N]   # odd N: single full-extent tile (block dim == full array dim is legal)
    for t in cands:
        if _flash_vmem_bytes(H, hd, C, t, t, out_bytes) <= vmem_budget:
            return t
    return cands[-1]


# ----------------------------- glue / wrapper ---------------------------------
def bag_of_attentions(x, params, num_heads=8):
    B, N, C = x.shape
    assert C % num_heads == 0, "C must be divisible by num_heads"
    H, hd = num_heads, C // num_heads
    scale = float(hd) ** -0.5
    out_dtype = x.dtype
    out_bytes = jnp.dtype(out_dtype).itemsize

    try:  # size tiles/limits against the real chip (v7x has half the VMEM of v5e/v6e)
        vmem_cap = int(pltpu.get_tpu_info().vmem_capacity_bytes)
    except Exception:
        vmem_cap = 128 << 20

    x_f32 = x.astype(jnp.float32)
    fusion_w = jax.nn.softmax(params["fusion"].astype(jnp.float32))          # (3,)

    # ---- hoisted gate pre-pass (full-token statistics; O(B*N*C) wrapper XLA) ----
    mlp_w1 = params["mlp_w1"].astype(jnp.float32)                            # (C, C//r)
    mlp_w2 = params["mlp_w2"].astype(jnp.float32)                            # (C//r, C)

    def _ch_mlp(z):
        return jnp.maximum(z @ mlp_w1, 0.0) @ mlp_w2

    ch_gate = jax.nn.sigmoid(_ch_mlp(x_f32.mean(axis=1)) + _ch_mlp(x_f32.max(axis=1)))
    ch_gate = (fusion_w[1] * ch_gate)[:, None, :]                            # (B, 1, C)

    conv_w = params["conv_w"].astype(jnp.float32)                            # (1, 2, 7)
    sp_in = jnp.stack([x_f32.mean(axis=2), x_f32.max(axis=2)], axis=1)       # (B, 2, N)
    sp_pad = jnp.pad(sp_in, ((0, 0), (0, 0), (3, 3)))
    sp_logit = jnp.zeros((B, N), jnp.float32)
    for t in range(7):                                                       # k=7, pad=3, no bias
        sp_logit = sp_logit + jnp.einsum("c,bcn->bn", conv_w[0, :, t], sp_pad[:, :, t:t + N])
    sp_gate = (fusion_w[2] * jax.nn.sigmoid(sp_logit))[:, :, None]           # (B, N, 1)

    # ---- fold attention scale / fusion w0 into the qkv weight columns (O(C^2), once) ----
    qkv_w = params["qkv_w"].astype(jnp.float32)                              # (C, 3C)
    col_scale = jnp.concatenate([
        jnp.full((C,), scale, jnp.float32),          # q columns: attention scale
        jnp.ones((C,), jnp.float32),                 # k columns
        jnp.broadcast_to(fusion_w[0], (C,)),         # v columns: fusion weight w0
    ])
    qkv_w = (qkv_w * col_scale[None, :]).astype(jnp.bfloat16)

    proj_w = params["proj_w"].astype(jnp.float32)                            # (C, C)
    proj_w_h = proj_w.reshape(H, hd, C).astype(jnp.bfloat16)                 # head-major rows
    proj_w_f = proj_w.astype(jnp.bfloat16)
    proj_b = params["proj_b"].astype(jnp.float32)[None, :]                   # (1, C)

    x_bf = x_f32.astype(jnp.bfloat16)

    tq = _pick_token_tile(N, H, hd, C, out_bytes, vmem_budget=int(0.6 * vmem_cap))
    tk = tq
    nq, nk = N // tq, N // tk

    # ------------------------------ kernel 1: qkv projection ------------------------------
    qkv_est = 2 * (tq * C * 2 + tq * 3 * C * 2) + C * 3 * C * 2 + tq * 3 * C * 4
    qkv = pl.pallas_call(
        _qkv_proj_kernel,
        out_shape=jax.ShapeDtypeStruct((B, N, 3 * C), jnp.bfloat16),
        grid_spec=pltpu.PrefetchScalarGridSpec(
            num_scalar_prefetch=0,
            grid=(B, nq),
            in_specs=[
                pl.BlockSpec((1, tq, C), lambda b, i: (b, i, 0)),
                pl.BlockSpec((C, 3 * C), lambda b, i: (0, 0),
                             pipeline_mode=pl.Buffered(1)),
            ],
            out_specs=pl.BlockSpec((1, tq, 3 * C), lambda b, i: (b, i, 0)),
        ),
        compiler_params=pltpu.CompilerParams(
            dimension_semantics=("parallel", "parallel"),
            vmem_limit_bytes=min(max(int(qkv_est * 1.5), 16 << 20), 100 << 20)),
        cost_estimate=pl.CostEstimate(
            flops=2 * B * N * C * 3 * C, transcendentals=0,
            bytes_accessed=2 * (B * N * C + C * 3 * C + B * N * 3 * C)),
    )(x_bf, qkv_w)

    # One-time head-major relayout (wrapper XLA): columns of qkv are [q|k|v], each head-major.
    qkv = qkv.reshape(B, N, 3, H, hd)
    q = jnp.transpose(qkv[:, :, 0], (0, 2, 1, 3))                            # (B, H, N, hd)
    k = jnp.transpose(qkv[:, :, 1], (0, 2, 1, 3))
    v = jnp.transpose(qkv[:, :, 2], (0, 2, 1, 3))

    # ------------------- kernel 2: flash attention + fused gates + projection -------------------
    flash_est = _flash_vmem_bytes(H, hd, C, tq, tk, out_bytes)
    vmem_limit = min(max(int(flash_est * 1.3), 16 << 20),
                     min(100 << 20, int(0.9 * vmem_cap)))

    flops = 4 * B * H * N * N * hd + 4 * B * N * C * C
    transcendentals = B * H * N * N + B * N * C
    bytes_accessed = (2 * (q.size + k.size + v.size) + 2 * x_bf.size
                      + out_bytes * B * N * C
                      + 2 * (proj_w_h.size + proj_w_f.size)
                      + 4 * (ch_gate.size + sp_gate.size + proj_b.size))

    out = pl.pallas_call(
        _flash_fused_kernel,
        out_shape=jax.ShapeDtypeStruct((B, N, C), out_dtype),
        grid_spec=pltpu.PrefetchScalarGridSpec(
            num_scalar_prefetch=0,
            grid=(B, nq, nk),
            in_specs=[
                pl.BlockSpec((1, H, tq, hd), lambda b, qi, ki: (b, 0, qi, 0)),   # q
                pl.BlockSpec((1, H, tk, hd), lambda b, qi, ki: (b, 0, ki, 0)),   # k
                pl.BlockSpec((1, H, tk, hd), lambda b, qi, ki: (b, 0, ki, 0)),   # v
                pl.BlockSpec((1, tq, C), lambda b, qi, ki: (b, qi, 0)),          # x tile
                pl.BlockSpec((1, 1, C), lambda b, qi, ki: (b, 0, 0)),            # channel gate
                pl.BlockSpec((1, tq, 1), lambda b, qi, ki: (b, qi, 0)),          # spatial gate
                pl.BlockSpec((H, hd, C), lambda b, qi, ki: (0, 0, 0),
                             pipeline_mode=pl.Buffered(1)),                      # proj (heads)
                pl.BlockSpec((C, C), lambda b, qi, ki: (0, 0),
                             pipeline_mode=pl.Buffered(1)),                      # proj (flat)
                pl.BlockSpec((1, C), lambda b, qi, ki: (0, 0),
                             pipeline_mode=pl.Buffered(1)),                      # proj bias
            ],
            out_specs=pl.BlockSpec((1, tq, C), lambda b, qi, ki: (b, qi, 0)),
            scratch_shapes=[
                pltpu.VMEM((H, tq, 1), jnp.float32),    # m
                pltpu.VMEM((H, tq, 1), jnp.float32),    # l
                pltpu.VMEM((H, tq, hd), jnp.float32),   # acc
            ],
        ),
        compiler_params=pltpu.CompilerParams(
            dimension_semantics=("parallel", "parallel", "arbitrary"),
            vmem_limit_bytes=vmem_limit),
        cost_estimate=pl.CostEstimate(flops=flops, transcendentals=transcendentals,
                                      bytes_accessed=bytes_accessed),
    )(q, k, v, x_bf, ch_gate, sp_gate, proj_w_h, proj_w_f, proj_b)
    # TODO(synk): attn_drop / proj_drop are nn.Dropout(p=0.0) -> identity at inference; omitted.
    return out


# ----------------------------- pure-JAX reference ------------------------------
def reference(x, params, num_heads=8):
    B, N, C = x.shape
    hd = C // num_heads
    scale = hd ** -0.5
    qkv_w, proj_w, proj_b = params["qkv_w"], params["proj_w"], params["proj_b"]
    mlp_w1, mlp_w2 = params["mlp_w1"], params["mlp_w2"]
    conv_w, fusion = params["conv_w"], params["fusion"]

    # MHSA
    qkv = (x @ qkv_w).reshape(B, N, 3, num_heads, hd).transpose(2, 0, 3, 1, 4)
    q, k, v = qkv[0], qkv[1], qkv[2]                            # (B, H, N, hd)
    attn = jax.nn.softmax((q @ jnp.swapaxes(k, -2, -1)) * scale, axis=-1)
    mhsa = (attn @ v).transpose(0, 2, 1, 3).reshape(B, N, C)

    # Channel attention
    def mlp(z):
        return jnp.maximum(z @ mlp_w1, 0.0) @ mlp_w2
    ch = jax.nn.sigmoid(mlp(x.mean(axis=1)) + mlp(x.max(axis=1)))           # (B, C)
    channel_out = x * ch[:, None, :]

    # Spatial attention (Conv1d(2->1, k=7, pad=3, no bias))
    sp_in = jnp.stack([x.mean(axis=2), x.max(axis=2)], axis=1)              # (B, 2, N)
    pad = jnp.pad(sp_in, ((0, 0), (0, 0), (3, 3)))
    conv_out = jnp.zeros((B, N), jnp.float32)
    for t in range(7):
        conv_out = conv_out + jnp.einsum("c,bcn->bn", conv_w[0, :, t], pad[:, :, t:t + N])
    spatial_out = x * jax.nn.sigmoid(conv_out)[:, :, None]

    fw = jax.nn.softmax(fusion)
    fused = fw[0] * mhsa + fw[1] * channel_out + fw[2] * spatial_out
    return fused @ proj_w + proj_b[None, None, :]


# ----------------------------------- main --------------------------------------
if __name__ == "__main__":
    B, N, C = 2, 8, 32          # batch, tokens, dim
    NUM_HEADS = 8               # head_dim = 4
    R = 16                      # ChannelAttention reduction ratio -> hidden = 2

    key = jax.random.PRNGKey(0)
    ks = jax.random.split(key, 8)
    params = {
        "qkv_w":  0.05 * jax.random.normal(ks[0], (C, 3 * C), jnp.float32),
        "proj_w": 0.05 * jax.random.normal(ks[1], (C, C), jnp.float32),
        "proj_b": 0.05 * jax.random.normal(ks[2], (C,), jnp.float32),
        "mlp_w1": 0.05 * jax.random.normal(ks[3], (C, C // R), jnp.float32),
        "mlp_w2": 0.05 * jax.random.normal(ks[4], (C // R, C), jnp.float32),
        "conv_w": 0.05 * jax.random.normal(ks[5], (1, 2, 7), jnp.float32),
        "fusion": jnp.ones((3,), jnp.float32) / 3.0,   # matches nn.Parameter(torch.ones(3)/3)
    }
    x = jax.random.normal(ks[6], (B, N, C), jnp.float32)

    run = jax.jit(functools.partial(bag_of_attentions, num_heads=NUM_HEADS))
    out = jax.block_until_ready(run(x, params))

    ref = jax.block_until_ready(reference(x, params, num_heads=NUM_HEADS))
    # bf16 MXU operands with f32 accumulation + approx EUP reciprocal -> wider tolerance vs f32.
    np.testing.assert_allclose(np.asarray(out), np.asarray(ref), rtol=3e-2, atol=3e-2)

    print("KERNEL_OK")
</pallas_src>

<mosaic_0001>
module attributes {stable_mosaic.version = 11 : i64} {
  func.func @_qkv_proj_kernel(%arg0: i32, %arg1: i32, %arg2: memref<1x8x32xbf16, #tpu.memory_space<vmem>>, %arg3: memref<32x96xbf16, #tpu.memory_space<vmem>>, %arg4: memref<1x8x96xbf16, #tpu.memory_space<vmem>>) attributes {dimension_semantics = [#tpu.dimension_semantics<parallel>, #tpu.dimension_semantics<parallel>], iteration_bounds = array<i64: 2, 1>, scalar_prefetch = 0 : i64, scratch_operands = 0 : i64, tpu.core_type = #tpu.core_type<tc>, window_params = [{transform_indices = @transform_0, window_bounds = array<i64: 1, 8, 32>}, {pipeline_mode = #tpu.pipeline_mode<synchronous>, transform_indices = @transform_1, window_bounds = array<i64: 32, 96>}, {transform_indices = @transform_2, window_bounds = array<i64: 1, 8, 96>}]} {
    %c0 = arith.constant 0 : index
    %c0_0 = arith.constant 0 : index
    %c0_1 = arith.constant 0 : index
    %0 = vector.load %arg2[%c0, %c0_0, %c0_1] : memref<1x8x32xbf16, #tpu.memory_space<vmem>>, vector<1x8x32xbf16>
    %1 = vector.shape_cast %0 : vector<1x8x32xbf16> to vector<8x32xbf16>
    %c0_2 = arith.constant 0 : index
    %c0_3 = arith.constant 0 : index
    %2 = vector.load %arg3[%c0_2, %c0_3] : memref<32x96xbf16, #tpu.memory_space<vmem>>, vector<32x96xbf16>
    %cst = arith.constant dense<0.000000e+00> : vector<8x96xf32>
    %3 = tpu.matmul %1, %2, %cst {dimension_numbers = #tpu.dot_dimension_numbers<[1], [0], [0], [1], [0, 0, 1, 1], [], []>} : vector<8x32xbf16>, vector<32x96xbf16>, vector<8x96xf32> -> vector<8x96xf32>
    %4 = arith.truncf %3 : vector<8x96xf32> to vector<8x96xbf16>
    %c0_4 = arith.constant 0 : index
    %c0_5 = arith.constant 0 : index
    %c0_6 = arith.constant 0 : index
    %5 = vector.load %arg4[%c0_4, %c0_5, %c0_6] : memref<1x8x96xbf16, #tpu.memory_space<vmem>>, vector<1x8x96xbf16>
    %6 = vector.shape_cast %5 : vector<1x8x96xbf16> to vector<8x96xbf16>
    %7 = vector.shape_cast %4 : vector<8x96xbf16> to vector<1x8x96xbf16>
    tpu.vector_store %arg4[%c0_4, %c0_5, %c0_6], %7 {strides = array<i32>} : memref<1x8x96xbf16, #tpu.memory_space<vmem>>, vector<1x8x96xbf16>,
    return
  }
  func.func @transform_0(%arg0: i32, %arg1: i32) -> (i32, i32, i32) {
    %c0_i32 = arith.constant 0 : i32
    %c0_i32_0 = arith.constant 0 : i32
    return %arg0, %arg1, %c0_i32 : i32, i32, i32
  }
  func.func @transform_1(%arg0: i32, %arg1: i32) -> (i32, i32) {
    %c0_i32 = arith.constant 0 : i32
    %c0_i32_0 = arith.constant 0 : i32
    %c0_i32_1 = arith.constant 0 : i32
    return %c0_i32, %c0_i32_0 : i32, i32
  }
  func.func @transform_2(%arg0: i32, %arg1: i32) -> (i32, i32, i32) {
    %c0_i32 = arith.constant 0 : i32
    %c0_i32_0 = arith.constant 0 : i32
    return %arg0, %arg1, %c0_i32 : i32, i32, i32
  }
}

module attributes {stable_mosaic.version = 11 : i64} {
  func.func @_flash_fused_kernel(%arg0: i32, %arg1: i32, %arg2: i32, %arg3: memref<1x8x8x4xbf16, #tpu.memory_space<vmem>>, %arg4: memref<1x8x8x4xbf16, #tpu.memory_space<vmem>>, %arg5: memref<1x8x8x4xbf16, #tpu.memory_space<vmem>>, %arg6: memref<1x8x32xbf16, #tpu.memory_space<vmem>>, %arg7: memref<1x1x32xf32, #tpu.memory_space<vmem>>, %arg8: memref<1x8x1xf32, #tpu.memory_space<vmem>>, %arg9: memref<8x4x32xbf16, #tpu.memory_space<vmem>>, %arg10: memref<32x32xbf16, #tpu.memory_space<vmem>>, %arg11: memref<1x32xf32, #tpu.memory_space<vmem>>, %arg12: memref<1x8x32xf32, #tpu.memory_space<vmem>>, %arg13: memref<8x8x1xf32, #tpu.memory_space<vmem>>, %arg14: memref<8x8x1xf32, #tpu.memory_space<vmem>>, %arg15: memref<8x8x4xf32, #tpu.memory_space<vmem>>) attributes {dimension_semantics = [#tpu.dimension_semantics<parallel>, #tpu.dimension_semantics<parallel>, #tpu.dimension_semantics<arbitrary>], iteration_bounds = array<i64: 2, 1, 1>, scalar_prefetch = 0 : i64, scratch_operands = 3 : i64, tpu.core_type = #tpu.core_type<tc>, window_params = [{transform_indices = @transform_0, window_bounds = array<i64: 1, 8, 8, 4>}, {transform_indices = @transform_1, window_bounds = array<i64: 1, 8, 8, 4>}, {transform_indices = @transform_2, window_bounds = array<i64: 1, 8, 8, 4>}, {transform_indices = @transform_3, window_bounds = array<i64: 1, 8, 32>}, {transform_indices = @transform_4, window_bounds = array<i64: 1, 1, 32>}, {transform_indices = @transform_5, window_bounds = array<i64: 1, 8, 1>}, {pipeline_mode = #tpu.pipeline_mode<synchronous>, transform_indices = @transform_6, window_bounds = array<i64: 8, 4, 32>}, {pipeline_mode = #tpu.pipeline_mode<synchronous>, transform_indices = @transform_7, window_bounds = array<i64: 32, 32>}, {pipeline_mode = #tpu.pipeline_mode<synchronous>, transform_indices = @transform_8, window_bounds = array<i64: 1, 32>}, {transform_indices = @transform_9, window_bounds = array<i64: 1, 8, 32>}]} {
    %c0_i32 = arith.constant 0 : i32
    %0 = arith.cmpi eq, %arg2, %c0_i32 : i32
    %1 = arith.extui %0 : i1 to i32
    %c0_i32_0 = arith.constant 0 : i32
    %2 = arith.cmpi ne, %1, %c0_i32_0 : i32
    scf.if %2 {
      %cst_35 = arith.constant 0xFF800000 : f32
      %36 = vector.broadcast %cst_35 : f32 to vector<8x8x1xf32>
      %c0_36 = arith.constant 0 : index
      %c0_37 = arith.constant 0 : index
      %c0_38 = arith.constant 0 : index
      %37 = vector.load %arg13[%c0_36, %c0_37, %c0_38] : memref<8x8x1xf32, #tpu.memory_space<vmem>>, vector<8x8x1xf32>
      tpu.vector_store %arg13[%c0_36, %c0_37, %c0_38], %36 {strides = array<i32>} : memref<8x8x1xf32, #tpu.memory_space<vmem>>, vector<8x8x1xf32>,
      %cst_39 = arith.constant 0.000000e+00 : f32
      %38 = vector.broadcast %cst_39 : f32 to vector<8x8x1xf32>
      %c0_40 = arith.constant 0 : index
      %c0_41 = arith.constant 0 : index
      %c0_42 = arith.constant 0 : index
      %39 = vector.load %arg14[%c0_40, %c0_41, %c0_42] : memref<8x8x1xf32, #tpu.memory_space<vmem>>, vector<8x8x1xf32>
      tpu.vector_store %arg14[%c0_40, %c0_41, %c0_42], %38 {strides = array<i32>} : memref<8x8x1xf32, #tpu.memory_space<vmem>>, vector<8x8x1xf32>,
      %cst_43 = arith.constant 0.000000e+00 : f32
      %40 = vector.broadcast %cst_43 : f32 to vector<8x8x4xf32>
      %c0_44 = arith.constant 0 : index
      %c0_45 = arith.constant 0 : index
      %c0_46 = arith.constant 0 : index
      %41 = vector.load %arg15[%c0_44, %c0_45, %c0_46] : memref<8x8x4xf32, #tpu.memory_space<vmem>>, vector<8x8x4xf32>
      tpu.vector_store %arg15[%c0_44, %c0_45, %c0_46], %40 {strides = array<i32>} : memref<8x8x4xf32, #tpu.memory_space<vmem>>, vector<8x8x4xf32>,
    } else {
    }
    %c0 = arith.constant 0 : index
    %c0_1 = arith.constant 0 : index
    %c0_2 = arith.constant 0 : index
    %c0_3 = arith.constant 0 : index
    %3 = vector.load %arg3[%c0, %c0_1, %c0_2, %c0_3] : memref<1x8x8x4xbf16, #tpu.memory_space<vmem>>, vector<1x8x8x4xbf16>
    %4 = vector.shape_cast %3 : vector<1x8x8x4xbf16> to vector<8x8x4xbf16>
    %c0_4 = arith.constant 0 : index
    %c0_5 = arith.constant 0 : index
    %c0_6 = arith.constant 0 : index
    %c0_7 = arith.constant 0 : index
    %5 = vector.load %arg4[%c0_4, %c0_5, %c0_6, %c0_7] : memref<1x8x8x4xbf16, #tpu.memory_space<vmem>>, vector<1x8x8x4xbf16>
    %6 = vector.shape_cast %5 : vector<1x8x8x4xbf16> to vector<8x8x4xbf16>
    %c0_8 = arith.constant 0 : index
    %c0_9 = arith.constant 0 : index
    %c0_10 = arith.constant 0 : index
    %c0_11 = arith.constant 0 : index
    %7 = vector.load %arg5[%c0_8, %c0_9, %c0_10, %c0_11] : memref<1x8x8x4xbf16, #tpu.memory_space<vmem>>, vector<1x8x8x4xbf16>
    %8 = vector.shape_cast %7 : vector<1x8x8x4xbf16> to vector<8x8x4xbf16>
    "tpu.trace_start"() <{level = 10 : i32, message = "hqd,hkd->hqk"}> : () -> ()
    %cst = arith.constant dense<0.000000e+00> : vector<8x8x8xf32>
    %9 = tpu.matmul %4, %6, %cst {dimension_numbers = #tpu.dot_dimension_numbers<[2], [2], [1], [1], [0, 0, 0, 1, 1, 1], [0], [0]>} : vector<8x8x4xbf16>, vector<8x8x4xbf16>, vector<8x8x8xf32> -> vector<8x8x8xf32>
    "tpu.trace_stop"() : () -> ()
    %c0_12 = arith.constant 0 : index
    %c0_13 = arith.constant 0 : index
    %c0_14 = arith.constant 0 : index
    %10 = vector.load %arg13[%c0_12, %c0_13, %c0_14] : memref<8x8x1xf32, #tpu.memory_space<vmem>>, vector<8x8x1xf32>
    %cst_15 = arith.constant dense<0xFF800000> : vector<8x8xf32>
    %11 = vector.multi_reduction <maximumf>, %9, %cst_15 [2] : vector<8x8x8xf32> to vector<8x8xf32>
    %12 = vector.shape_cast %11 : vector<8x8xf32> to vector<8x8x1xf32>
    %13 = arith.maximumf %10, %12 : vector<8x8x1xf32>
    %14 = arith.subf %10, %13 : vector<8x8x1xf32>
    %15 = math.exp %14 : vector<8x8x1xf32>
    %16 = vector.broadcast %13 : vector<8x8x1xf32> to vector<8x8x8xf32>
    %17 = arith.subf %9, %16 : vector<8x8x8xf32>
    %18 = math.exp %17 : vector<8x8x8xf32>
    %c0_16 = arith.constant 0 : index
    %c0_17 = arith.constant 0 : index
    %c0_18 = arith.constant 0 : index
    %19 = vector.load %arg14[%c0_16, %c0_17, %c0_18] : memref<8x8x1xf32, #tpu.memory_space<vmem>>, vector<8x8x1xf32>
    %20 = arith.mulf %15, %19 : vector<8x8x1xf32>
    %cst_19 = arith.constant dense<0.000000e+00> : vector<8x8xf32>
    %21 = vector.multi_reduction <add>, %18, %cst_19 [2] : vector<8x8x8xf32> to vector<8x8xf32>
    %22 = vector.shape_cast %21 : vector<8x8xf32> to vector<8x8x1xf32>
    %23 = arith.addf %20, %22 : vector<8x8x1xf32>
    %c0_20 = arith.constant 0 : index
    %c0_21 = arith.constant 0 : index
    %c0_22 = arith.constant 0 : index
    %24 = vector.load %arg14[%c0_20, %c0_21, %c0_22] : memref<8x8x1xf32, #tpu.memory_space<vmem>>, vector<8x8x1xf32>
    tpu.vector_store %arg14[%c0_20, %c0_21, %c0_22], %23 {strides = array<i32>} : memref<8x8x1xf32, #tpu.memory_space<vmem>>, vector<8x8x1xf32>,
    %c0_23 = arith.constant 0 : index
    %c0_24 = arith.constant 0 : index
    %c0_25 = arith.constant 0 : index
    %25 = vector.load %arg15[%c0_23, %c0_24, %c0_25] : memref<8x8x4xf32, #tpu.memory_space<vmem>>, vector<8x8x4xf32>
    %26 = vector.broadcast %15 : vector<8x8x1xf32> to vector<8x8x4xf32>
    %27 = arith.mulf %26, %25 : vector<8x8x4xf32>
    %28 = arith.truncf %18 : vector<8x8x8xf32> to vector<8x8x8xbf16>
    "tpu.trace_start"() <{level = 10 : i32, message = "hqk,hkd->hqd"}> : () -> ()
    %cst_26 = arith.constant dense<0.000000e+00> : vector<8x8x4xf32>
    %29 = tpu.matmul %28, %8, %cst_26 {dimension_numbers = #tpu.dot_dimension_numbers<[2], [1], [1], [2], [0, 0, 0, 1, 1, 2], [0], [0]>} : vector<8x8x8xbf16>, vector<8x8x4xbf16>, vector<8x8x4xf32> -> vector<8x8x4xf32>
    "tpu.trace_stop"() : () -> ()
    %30 = arith.addf %27, %29 : vector<8x8x4xf32>
    %c0_27 = arith.constant 0 : index
    %c0_28 = arith.constant 0 : index
    %c0_29 = arith.constant 0 : index
    %31 = vector.load %arg15[%c0_27, %c0_28, %c0_29] : memref<8x8x4xf32, #tpu.memory_space<vmem>>, vector<8x8x4xf32>
    tpu.vector_store %arg15[%c0_27, %c0_28, %c0_29], %30 {strides = array<i32>} : memref<8x8x4xf32, #tpu.memory_space<vmem>>, vector<8x8x4xf32>,
    %c0_30 = arith.constant 0 : index
    %c0_31 = arith.constant 0 : index
    %c0_32 = arith.constant 0 : index
    %32 = vector.load %arg13[%c0_30, %c0_31, %c0_32] : memref<8x8x1xf32, #tpu.memory_space<vmem>>, vector<8x8x1xf32>
    tpu.vector_store %arg13[%c0_30, %c0_31, %c0_32], %13 {strides = array<i32>} : memref<8x8x1xf32, #tpu.memory_space<vmem>>, vector<8x8x1xf32>,
    %c0_i32_33 = arith.constant 0 : i32
    %33 = arith.cmpi eq, %arg2, %c0_i32_33 : i32
    %34 = arith.extui %33 : i1 to i32
    %c0_i32_34 = arith.constant 0 : i32
    %35 = arith.cmpi ne, %34, %c0_i32_34 : i32
    scf.if %35 {
      %c0_35 = arith.constant 0 : index
      %c0_36 = arith.constant 0 : index
      %c0_37 = arith.constant 0 : index
      %36 = vector.load %arg14[%c0_35, %c0_36, %c0_37] : memref<8x8x1xf32, #tpu.memory_space<vmem>>, vector<8x8x1xf32>
      %37 = tpu.reciprocal %36 {approx = true} : vector<8x8x1xf32> -> vector<8x8x1xf32>
      %c0_38 = arith.constant 0 : index
      %c0_39 = arith.constant 0 : index
      %c0_40 = arith.constant 0 : index
      %38 = vector.load %arg15[%c0_38, %c0_39, %c0_40] : memref<8x8x4xf32, #tpu.memory_space<vmem>>, vector<8x8x4xf32>
      %39 = vector.broadcast %37 : vector<8x8x1xf32> to vector<8x8x4xf32>
      %40 = arith.mulf %38, %39 : vector<8x8x4xf32>
      %41 = arith.truncf %40 : vector<8x8x4xf32> to vector<8x8x4xbf16>
      %c0_41 = arith.constant 0 : index
      %c0_42 = arith.constant 0 : index
      %c0_43 = arith.constant 0 : index
      %42 = vector.load %arg9[%c0_41, %c0_42, %c0_43] : memref<8x4x32xbf16, #tpu.memory_space<vmem>>, vector<8x4x32xbf16>
      "tpu.trace_start"() <{level = 10 : i32, message = "hqd,hdc->hqc"}> : () -> ()
      %cst_44 = arith.constant dense<0.000000e+00> : vector<8x8x32xf32>
      %43 = tpu.matmul %41, %42, %cst_44 {dimension_numbers = #tpu.dot_dimension_numbers<[2], [1], [1], [2], [0, 0, 0, 1, 1, 2], [0], [0]>} : vector<8x8x4xbf16>, vector<8x4x32xbf16>, vector<8x8x32xf32> -> vector<8x8x32xf32>
      "tpu.trace_stop"() : () -> ()
      %cst_45 = arith.constant dense<0.000000e+00> : vector<8x32xf32>
      %44 = vector.multi_reduction <add>, %43, %cst_45 [0] : vector<8x8x32xf32> to vector<8x32xf32>
      %c0_46 = arith.constant 0 : index
      %c0_47 = arith.constant 0 : index
      %c0_48 = arith.constant 0 : index
      %45 = vector.load %arg6[%c0_46, %c0_47, %c0_48] : memref<1x8x32xbf16, #tpu.memory_space<vmem>>, vector<1x8x32xbf16>
      %46 = vector.shape_cast %45 : vector<1x8x32xbf16> to vector<8x32xbf16>
      %47 = arith.extf %46 : vector<8x32xbf16> to vector<8x32xf32>
      %c0_49 = arith.constant 0 : index
      %c0_50 = arith.constant 0 : index
      %c0_51 = arith.constant 0 : index
      %48 = vector.load %arg7[%c0_49, %c0_50, %c0_51] : memref<1x1x32xf32, #tpu.memory_space<vmem>>, vector<1x1x32xf32>
      %49 = vector.shape_cast %48 : vector<1x1x32xf32> to vector<1x32xf32>
      %c0_52 = arith.constant 0 : index
      %c0_53 = arith.constant 0 : index
      %c0_54 = arith.constant 0 : index
      %50 = vector.load %arg8[%c0_52, %c0_53, %c0_54] : memref<1x8x1xf32, #tpu.memory_space<vmem>>, vector<1x8x1xf32>
      %51 = vector.shape_cast %50 : vector<1x8x1xf32> to vector<8x1xf32>
      %52 = vector.broadcast %49 : vector<1x32xf32> to vector<8x32xf32>
      %53 = vector.broadcast %51 : vector<8x1xf32> to vector<8x32xf32>
      %54 = arith.addf %52, %53 : vector<8x32xf32>
      %55 = arith.mulf %47, %54 : vector<8x32xf32>
      %56 = arith.truncf %55 : vector<8x32xf32> to vector<8x32xbf16>
      %c0_55 = arith.constant 0 : index
      %c0_56 = arith.constant 0 : index
      %57 = vector.load %arg10[%c0_55, %c0_56] : memref<32x32xbf16, #tpu.memory_space<vmem>>, vector<32x32xbf16>
      %cst_57 = arith.constant dense<0.000000e+00> : vector<8x32xf32>
      %58 = tpu.matmul %56, %57, %cst_57 {dimension_numbers = #tpu.dot_dimension_numbers<[1], [0], [0], [1], [0, 0, 1, 1], [], []>} : vector<8x32xbf16>, vector<32x32xbf16>, vector<8x32xf32> -> vector<8x32xf32>
      %59 = arith.addf %44, %58 : vector<8x32xf32>
      %c0_58 = arith.constant 0 : index
      %c0_59 = arith.constant 0 : index
      %60 = vector.load %arg11[%c0_58, %c0_59] : memref<1x32xf32, #tpu.memory_space<vmem>>, vector<1x32xf32>
      %61 = vector.broadcast %60 : vector<1x32xf32> to vector<8x32xf32>
      %62 = arith.addf %59, %61 : vector<8x32xf32>
      %c0_60 = arith.constant 0 : index
      %c0_61 = arith.constant 0 : index
      %c0_62 = arith.constant 0 : index
      %63 = vector.load %arg12[%c0_60, %c0_61, %c0_62] : memref<1x8x32xf32, #tpu.memory_space<vmem>>, vector<1x8x32xf32>
      %64 = vector.shape_cast %63 : vector<1x8x32xf32> to vector<8x32xf32>
      %65 = vector.shape_cast %62 : vector<8x32xf32> to vector<1x8x32xf32>
      tpu.vector_store %arg12[%c0_60, %c0_61, %c0_62], %65 {strides = array<i32>} : memref<1x8x32xf32, #tpu.memory_space<vmem>>, vector<1x8x32xf32>,
    } else {
    }
    return
  }
  func.func @transform_0(%arg0: i32, %arg1: i32, %arg2: i32) -> (i32, i32, i32, i32) {
    %c0_i32 = arith.constant 0 : i32
    %c0_i32_0 = arith.constant 0 : i32
    %c0_i32_1 = arith.constant 0 : i32
    return %arg0, %c0_i32, %arg1, %c0_i32_0 : i32, i32, i32, i32
  }
  func.func @transform_1(%arg0: i32, %arg1: i32, %arg2: i32) -> (i32, i32, i32, i32) {
    %c0_i32 = arith.constant 0 : i32
    %c0_i32_0 = arith.constant 0 : i32
    %c0_i32_1 = arith.constant 0 : i32
    return %arg0, %c0_i32, %arg2, %c0_i32_0 : i32, i32, i32, i32
  }
  func.func @transform_2(%arg0: i32, %arg1: i32, %arg2: i32) -> (i32, i32, i32, i32) {
    %c0_i32 = arith.constant 0 : i32
    %c0_i32_0 = arith.constant 0 : i32
    %c0_i32_1 = arith.constant 0 : i32
    return %arg0, %c0_i32, %arg2, %c0_i32_0 : i32, i32, i32, i32
  }
  func.func @transform_3(%arg0: i32, %arg1: i32, %arg2: i32) -> (i32, i32, i32) {
    %c0_i32 = arith.constant 0 : i32
    %c0_i32_0 = arith.constant 0 : i32
    return %arg0, %arg1, %c0_i32 : i32, i32, i32
  }
  func.func @transform_4(%arg0: i32, %arg1: i32, %arg2: i32) -> (i32, i32, i32) {
    %c0_i32 = arith.constant 0 : i32
    %c0_i32_0 = arith.constant 0 : i32
    %c0_i32_1 = arith.constant 0 : i32
    return %arg0, %c0_i32, %c0_i32_0 : i32, i32, i32
  }
  func.func @transform_5(%arg0: i32, %arg1: i32, %arg2: i32) -> (i32, i32, i32) {
    %c0_i32 = arith.constant 0 : i32
    %c0_i32_0 = arith.constant 0 : i32
    return %arg0, %arg1, %c0_i32 : i32, i32, i32
  }
  func.func @transform_6(%arg0: i32, %arg1: i32, %arg2: i32) -> (i32, i32, i32) {
    %c0_i32 = arith.constant 0 : i32
    %c0_i32_0 = arith.constant 0 : i32
    %c0_i32_1 = arith.constant 0 : i32
    %c0_i32_2 = arith.constant 0 : i32
    return %c0_i32, %c0_i32_0, %c0_i32_1 : i32, i32, i32
  }
  func.func @transform_7(%arg0: i32, %arg1: i32, %arg2: i32) -> (i32, i32) {
    %c0_i32 = arith.constant 0 : i32
    %c0_i32_0 = arith.constant 0 : i32
    %c0_i32_1 = arith.constant 0 : i32
    return %c0_i32, %c0_i32_0 : i32, i32
  }
  func.func @transform_8(%arg0: i32, %arg1: i32, %arg2: i32) -> (i32, i32) {
    %c0_i32 = arith.constant 0 : i32
    %c0_i32_0 = arith.constant 0 : i32
    %c0_i32_1 = arith.constant 0 : i32
    return %c0_i32, %c0_i32_0 : i32, i32
  }
  func.func @transform_9(%arg0: i32, %arg1: i32, %arg2: i32) -> (i32, i32, i32) {
    %c0_i32 = arith.constant 0 : i32
    %c0_i32_0 = arith.constant 0 : i32
    return %arg0, %arg1, %c0_i32 : i32, i32, i32
  }
}

</mosaic_0001>

<llo_original>
// kernel: bag_of_attentions.2
$region0: #{bag_of_attentions.2}
  #allocation0 [shape = 'u32[]', space=smem, size = 0x4, offset = 0x4, fixed_abs, tag = 'smem constant byte address 0x4 - core index']
  #allocation1 [shape = 'u32[144,128]{1,0:T(1,128)}', space=vmem, size = 0x12000, scoped, tag = 'internal scratch']
  %s0 = inlined_call_operand.vmem [shape: bf16[2,8,32], index: 0, kind: input, shape index: {}]
  %s1 = inlined_call_operand.vmem [shape: bf16[32,96], index: 1, kind: input, shape index: {}]
  %s2 = inlined_call_operand.vmem [shape: bf16[2,8,96], index: 2, kind: output, shape index: {}]
  %s3 = sld [smem:[#allocation0]]
  $region41: #{bag_of_attentions.2} parent=0
    _
  %s5 = ssub.s32 1, %s3
  %s6 = scalar_select 0, %s5, %s3
  loop: start=0, step=1, limit=4
  $region2: #{bag_of_attentions.2} parent=0 // loop_pre_header
    _
  $region3: #{bag_of_attentions.2} parent=0 // loop_header
    %s8 = sphi 0, %s12
    %p9 = scmp.ge.s32.totalorder %s8, 4
    %s15 = sphi 0, %s27
    %s16 = sphi 0, %s23
    %s17 = sphi 0, %s15
    %s18 = sphi 0, %s16
    %s19 = sphi 0, %s17
    %s20 = sphi 0, %s18
    %s32 = sphi 0, %s34
    %s35 = sphi 0, %s32
    %s36 = sphi 0, %s35
    %s52 = sphi 0, %s36
    %s56 = sphi 0, %s56
    %s58 = sphi 0, %s56
    %s59 = sphi 0, %s58
    %s73 = sphi 0, %s59
    %s81 = sphi 0, %s83
    %s84 = sphi 0, %s81
    %s85 = sphi 0, %s84
    %s101 = sphi 0, %s85
  $region4: #{bag_of_attentions.2} parent=0 // loop_header_branch
    %11 = sbr.rel (%p9) target = $region8
  $region5: #{bag_of_attentions.2} parent=0 // loop_body
    %s13 = ssub.s32 %s8, 1
    %s14 = ssub.s32 %s8, 2
    %s21 = sadd.s32 1, %s16
    %p22 = scmp.ge.s32.totalorder %s21, 1
    %s23 = scalar_select %p22, 0, %s21
    %s24 = sadd.s32 1, %s15
    %s25 = scalar_select %p22, %s24, %s15
    %p26 = scmp.ge.s32.totalorder %s25, 2
    %s27 = scalar_select %p26, 0, %s25
    %s28 = ssub.s32 %s15, %s27
    %s29 = ssub.s32 %s16, %s23
    %s30 = sor.u32 %s28, %s29
    %p31 = scmp.eq.s32.totalorder %s30, 0
    %s33 = sadd.s32 %s32, 1
    %s34 = scalar_select %p31, %s32, %s33
    %p37 = pneg %p31
    %p38 = scmp.eq.s32.totalorder %s8, 1
    %p39 = por %p37, %p38
    %p40 = scmp.ne.s32.totalorder %s32, %s35
    %p41 = scmp.eq.s32.totalorder %s8, 0
    %p42 = por %p40, %p41
    %p43 = scmp.ne.s32.totalorder %s32, %s35
    %p44 = scmp.eq.s32.totalorder %s13, 1
    %p45 = por %p43, %p44
    %p46 = scmp.ne.s32.totalorder %s35, %s36
    %p47 = scmp.eq.s32.totalorder %s13, 0
    %p48 = por %p46, %p47
    %p49 = scmp.ne.s32.totalorder %s35, %s36
    %p50 = scmp.eq.s32.totalorder %s14, 1
    %p51 = por %p49, %p50
    %p53 = scmp.ne.s32.totalorder %s36, %s52
    %p54 = scmp.eq.s32.totalorder %s14, 0
    %p55 = por %p53, %p54
    %s57 = sadd.s32 %s56, 1
    %p60 = scmp.eq.s32.totalorder %s8, 1
    %p61 = scmp.ne.s32.totalorder %s56, %s58
    %p62 = scmp.eq.s32.totalorder %s8, 0
    %p63 = por %p61, %p62
    %p64 = scmp.ne.s32.totalorder %s56, %s58
    %p65 = scmp.eq.s32.totalorder %s13, 1
    %p66 = por %p64, %p65
    %p67 = scmp.ne.s32.totalorder %s58, %s59
    %p68 = scmp.eq.s32.totalorder %s13, 0
    %p69 = por %p67, %p68
    %p70 = scmp.ne.s32.totalorder %s58, %s59
    %p71 = scmp.eq.s32.totalorder %s14, 1
    %p72 = por %p70, %p71
    %p74 = scmp.ne.s32.totalorder %s59, %s73
    %p75 = scmp.eq.s32.totalorder %s14, 0
    %p76 = por %p74, %p75
    %s77 = ssub.s32 %s15, %s27
    %s78 = ssub.s32 %s16, %s23
    %s79 = sor.u32 %s77, %s78
    %p80 = scmp.eq.s32.totalorder %s79, 0
    %s82 = sadd.s32 %s81, 1
    %s83 = scalar_select %p80, %s81, %s82
    %p86 = pneg %p80
    %p87 = scmp.eq.s32.totalorder %s8, 1
    %p88 = por %p86, %p87
    %p89 = scmp.ne.s32.totalorder %s81, %s84
    %p90 = scmp.eq.s32.totalorder %s8, 0
    %p91 = por %p89, %p90
    %p92 = scmp.ne.s32.totalorder %s81, %s84
    %p93 = scmp.eq.s32.totalorder %s13, 1
    %p94 = por %p92, %p93
    %p95 = scmp.ne.s32.totalorder %s84, %s85
    %p96 = scmp.eq.s32.totalorder %s13, 0
    %p97 = por %p95, %p96
    %p98 = scmp.ne.s32.totalorder %s84, %s85
    %p99 = scmp.eq.s32.totalorder %s14, 1
    %p100 = por %p98, %p99
    %p102 = scmp.ne.s32.totalorder %s85, %s101
    %p103 = scmp.eq.s32.totalorder %s14, 0
    %p104 = por %p102, %p103
    %p105 = scmp.le.s32.totalorder 1, %s8
    %p106 = scmp.lt.s32.totalorder %s8, 3
    %p107 = pnand %p105, %p106
    %p108 = pneg %p107
    // Predicated region
    $region9: #{bag_of_attentions.2} parent=5 // pred_check
      _
    $region10: #{bag_of_attentions.2} parent=5 // pred_check_branch
      %110 = sbr.rel (%p107) target = $region12
    $region11: #{bag_of_attentions.2} parent=5 // pred_region
      %s111 = ssub.s32 %s8, 1
      // Predicated region
      $region13: #{bag_of_attentions.2} parent=11 // pred_check
        %p112 = pneg %p69
      $region14: #{bag_of_attentions.2} parent=11 // pred_check_branch
        %114 = sbr.rel (%p112) target = $region16
      $region15: #{bag_of_attentions.2} parent=11 // pred_region
        _
      $region16: #{bag_of_attentions.2} parent=11 // pred_fallthru
        _
    $region12: #{bag_of_attentions.2} parent=5 // pred_fallthru
      _
    %p115 = scmp.lt.s32.totalorder %s8, 2
    // Predicated region
    $region17: #{bag_of_attentions.2} parent=5 // pred_check
      %p116 = pneg %p115
    $region18: #{bag_of_attentions.2} parent=5 // pred_check_branch
      %118 = sbr.rel (%p116) target = $region20
    $region19: #{bag_of_attentions.2} parent=5 // pred_region
      // Predicated region
      $region21: #{bag_of_attentions.2} parent=19 // pred_check
        %p119 = pneg %p42
      $region22: #{bag_of_attentions.2} parent=19 // pred_check_branch
        %121 = sbr.rel (%p119) target = $region24
      $region23: #{bag_of_attentions.2} parent=19 // pred_region
        %p122 = scmp.lt.s32.totalorder %s15, 1
        %s123 = scalar_select %p122, %s15, 1
        %p124 = scmp.lt.s32.totalorder %s16, 0
        %s125 = scalar_select %p124, %s16, 0
        %s126 = sadd.s32 %s125, %s123
        %s127 = smul.addr %s126, 4
        %s128 = scalar_lea.vmem %s0, %s127
      $region24: #{bag_of_attentions.2} parent=19 // pred_fallthru
        _
    $region20: #{bag_of_attentions.2} parent=5 // pred_fallthru
      _
    %p129 = scmp.le.s32.totalorder 1, %s8
    %p130 = scmp.lt.s32.totalorder %s8, 3
    %p131 = pnand %p129, %p130
    %p132 = pneg %p131
    // Predicated region
    $region25: #{bag_of_attentions.2} parent=5 // pred_check
      _
    $region26: #{bag_of_attentions.2} parent=5 // pred_check_branch
      %134 = sbr.rel (%p131) target = $region28
    $region27: #{bag_of_attentions.2} parent=5 // pred_region
      %s135 = ssub.s32 %s8, 1
      %p136 = scmp.lt.s32.totalorder %s17, 1
      %s137 = scalar_select %p136, %s17, 1
      %p138 = scmp.lt.s32.totalorder %s18, 0
      %s139 = scalar_select %p138, %s18, 0
      %s140 = sadd.s32 %s139, %s137
      %s141 = smul.addr %s140, 4
      %s142 = scalar_lea.vmem %s0, %s141
      %p143 = pneg %p48
      %p144 = pneg %p45
      %p145 = pneg %p69
      %p146 = pneg %p66
      %p147 = pneg %p97
      %p148 = pneg %p94
      %p149 = scmp.lt.s32.totalorder %s17, 1
      %s150 = scalar_select %p149, %s17, 1
      %p151 = scmp.lt.s32.totalorder %s18, 0
      %s152 = scalar_select %p151, %s18, 0
      %s153 = sadd.s32 %s152, %s150
      %s154 = smul.addr %s153, 4
      %s155 = scalar_lea.vmem %s2, %s154
      %p156 = scmp.lt.s32.totalorder %s17, 1
      %s157 = scalar_select %p156, %s17, 1
      %p158 = scmp.lt.s32.totalorder %s18, 0
      %s159 = scalar_select %p158, %s18, 0
      %s160 = sadd.s32 %s159, %s157
      %s161 = smul.addr %s160, 4
      %s162 = scalar_lea.vmem %s0, %s161
      %p163 = scmp.lt.s32.totalorder %s17, 1
      %s164 = scalar_select %p163, %s17, 1
      %p165 = scmp.lt.s32.totalorder %s18, 0
      %s166 = scalar_select %p165, %s18, 0
      %s167 = sadd.s32 %s166, %s164
      %s168 = smul.addr %s167, 4
      %s169 = scalar_lea.vmem %s2, %s168
      %v171 = vld [vmem:[%s162] sm:$0xf]
      %v172 = vld [vmem:[%s1] sm:$0xf]
      %v173 = vld [vmem:[%s1 + $0x4] sm:$0xf]
      %v174 = vld [vmem:[%s1 + $0x8] sm:$0xf]
      %v175 = vld [vmem:[%s1 + $0xc] sm:$0xf]
      %v180 = vunpack.c.l.b16 %v172
      %v181 = vunpack.c.l.b16 %v173
      %v182 = vunpack.c.l.b16 %v174
      %v183 = vunpack.c.l.b16 %v175
      %v184 = vpack.c.b16 %v181, %v180
      %v185 = vpack.c.b16 %v183, %v182
      %vm188 = vcmask 261120
      %v190 = vsel %vm188, %v171, 0
      %192 = vmatprep.subr.bf16.mxu0 0
      %193 = vmatpush1.bf16.msra.mxu0 %v184
      %194 = vmatprep.subr.bf16.mxu0 0
      %195 = vmatpush1.bf16.msra.mxu0 %v185
      %196 = vmatprep.subr.bf16.mxu0 0
      %197 = vmatpush1.bf16.msra.mxu0 0
      %198 = vmatprep.subr.bf16.mxu0 0
      %199 = vmatpush1.bf16.msra.mxu0 0
      %200 = vmatprep.subr.bf16.mxu0 0
      %201 = vmatpush1.bf16.msra.mxu0 0
      %202 = vmatprep.subr.bf16.mxu0 0
      %203 = vmatpush1.bf16.msra.mxu0 0
      %204 = vmatprep.subr.bf16.mxu0 0
      %205 = vmatpush1.bf16.msra.mxu0 0
      %206 = vmatprep.subr.bf16.mxu0 0
      %207 = vmatpush1.bf16.msra.mxu0 0
      %208 = vmatprep.subr.bf16.mxu0 0
      %209 = vmatpush1.bf16.msra.mxu0 0
      %210 = vmatprep.subr.bf16.mxu0 0
      %211 = vmatpush1.bf16.msra.mxu0 0
      %212 = vmatprep.subr.bf16.mxu0 0
      %213 = vmatpush1.bf16.msra.mxu0 0
      %214 = vmatprep.subr.bf16.mxu0 0
      %215 = vmatpush1.bf16.msra.mxu0 0
      %216 = vmatprep.subr.bf16.mxu0 0
      %217 = vmatpush1.bf16.msra.mxu0 0
      %218 = vmatprep.subr.bf16.mxu0 0
      %219 = vmatpush1.bf16.msra.mxu0 0
      %220 = vmatprep.subr.bf16.mxu0 0
      %221 = vmatpush1.bf16.msra.mxu0 0
      %222 = vmatprep.subr.bf16.mxu0 0
      %223 = vmatpush1.bf16.msra.mxu0 0
      %224 = vmatprep.mubr.bf16.mxu0 0
      %225 = vmatmul.mubr.bf16.gmra.mrb[0].mxu0 %v190
      %v226 = vpop.f32.mrb[0].mxu0
      %v227 = vadd.f32 0.0, %v226
      %v228 = vpop.f32.mrb[0].mxu0
      %v229 = vpop.f32.mrb[0].mxu0
      %v230 = vpop.f32.mrb[0].mxu0
      %231 = vdwg.mxu0
      %v232 = vpack.c.bf16 %v227, %v227
      %vm233 = vcmask 781312
      %234 = vst.msk [vmem:[%s169] sm:$0xf] %vm233, %v232
      %p235 = scmp.lt.s32.totalorder %s17, 1
      %s236 = scalar_select %p235, %s17, 1
      %p237 = scmp.lt.s32.totalorder %s18, 0
      %s238 = scalar_select %p237, %s18, 0
      %s239 = sadd.s32 %s238, %s236
      %s240 = smul.addr %s239, 4
      %s241 = scalar_lea.vmem %s2, %s240
      // Predicated region
      $region29: #{bag_of_attentions.2} parent=27 // pred_check
        %p242 = pneg %p94
      $region30: #{bag_of_attentions.2} parent=27 // pred_check_branch
        %244 = sbr.rel (%p242) target = $region32
      $region31: #{bag_of_attentions.2} parent=27 // pred_region
        _
      $region32: #{bag_of_attentions.2} parent=27 // pred_fallthru
        _
    $region28: #{bag_of_attentions.2} parent=5 // pred_fallthru
      _
    %p245 = scmp.le.s32.totalorder 2, %s8
    // Predicated region
    $region33: #{bag_of_attentions.2} parent=5 // pred_check
      %p246 = pneg %p245
    $region34: #{bag_of_attentions.2} parent=5 // pred_check_branch
      %248 = sbr.rel (%p246) target = $region36
    $region35: #{bag_of_attentions.2} parent=5 // pred_region
      %s249 = ssub.s32 %s8, 2
      // Predicated region
      $region37: #{bag_of_attentions.2} parent=35 // pred_check
        %p250 = pneg %p100
      $region38: #{bag_of_attentions.2} parent=35 // pred_check_branch
        %252 = sbr.rel (%p250) target = $region40
      $region39: #{bag_of_attentions.2} parent=35 // pred_region
        %p253 = scmp.lt.s32.totalorder %s19, 1
        %s254 = scalar_select %p253, %s19, 1
        %p255 = scmp.lt.s32.totalorder %s20, 0
        %s256 = scalar_select %p255, %s20, 0
        %s257 = sadd.s32 %s256, %s254
        %s258 = smul.addr %s257, 4
        %s259 = scalar_lea.vmem %s2, %s258
      $region40: #{bag_of_attentions.2} parent=35 // pred_fallthru
        _
    $region36: #{bag_of_attentions.2} parent=5 // pred_fallthru
      _
  $region6: #{bag_of_attentions.2} parent=0 // loop_footer
    %s12 = sadd.s32 1, %s8
  $region7: #{bag_of_attentions.2} parent=0 // loop_footer_branch
    %7 = sbr.rel target = $region3
  $region8: #{bag_of_attentions.2} parent=0 // loop_exit
    _

// kernel: bag_of_attentions.3
$region0: #{bag_of_attentions.3}
  #allocation0 [shape = 'u32[]', space=smem, size = 0x4, offset = 0x4, fixed_abs, tag = 'smem constant byte address 0x4 - core index']
  #allocation1 [shape = 'u32[144,128]{1,0:T(1,128)}', space=vmem, size = 0x12000, scoped, tag = 'internal scratch']
  #allocation2 [shape = 'f32[8,8,1]{2,1,0:T(8,128)}', space=vmem, size = 0x8000, scoped, tag = 'scratch operand']
  #allocation3 [shape = 'f32[8,8,1]{2,1,0:T(8,128)}', space=vmem, size = 0x8000, scoped, tag = 'scratch operand']
  #allocation4 [shape = 'f32[8,8,4]{2,1,0:T(8,128)}', space=vmem, size = 0x8000, scoped, tag = 'scratch operand']
  %s0 = inlined_call_operand.vmem [shape: bf16[2,8,8,4], index: 0, kind: input, shape index: {}]
  %s1 = inlined_call_operand.vmem [shape: bf16[2,8,8,4], index: 1, kind: input, shape index: {}]
  %s2 = inlined_call_operand.vmem [shape: bf16[2,8,8,4], index: 2, kind: input, shape index: {}]
  %s3 = inlined_call_operand.vmem [shape: bf16[2,8,32], index: 3, kind: input, shape index: {}]
  %s4 = inlined_call_operand.vmem [shape: f32[2,1,32], index: 4, kind: input, shape index: {}]
  %s5 = inlined_call_operand.vmem [shape: f32[2,8,1], index: 5, kind: input, shape index: {}]
  %s6 = inlined_call_operand.vmem [shape: bf16[8,4,32], index: 6, kind: input, shape index: {}, may-alias: {6,7}]
  %s7 = inlined_call_operand.vmem [shape: bf16[32,32], index: 7, kind: input, shape index: {}, may-alias: {6,7}]
  %s8 = inlined_call_operand.vmem [shape: f32[1,32], index: 8, kind: input, shape index: {}]
  %s9 = inlined_call_operand.hbm [shape: f32[2,8,32], index: 9, kind: output, shape index: {}]
  %s10 = sld [smem:[#allocation0]]
  $region77: #{bag_of_attentions.3} parent=0
    _
  %s12 = ssub.s32 1, %s10
  %s13 = scalar_select 0, %s12, %s10
  $region1: #{bag_of_attentions.3} parent=0
    #allocation5 [shape = 'u8[8192]{0}', space=vmem, size = 0x2000, scoped, tag = 'output window, operand 0']
    #allocation6 [shape = 's32[2]{0}', space=sflag, size = 0x8, scoped, tag = 'scoped memory for bag_of_attentions.3']
    %14 = vsyncpa [#allocation6], 0
    %s15 = scalar_lea.sflag [#allocation6], 1
    %16 = vsyncpa %s15, 0
    loop: start=0, step=1, limit=4
    $region2: #{bag_of_attentions.3} parent=1 // loop_pre_header
      _
    $region3: #{bag_of_attentions.3} parent=1 // loop_header
      %s18 = sphi 0, %s22
      %p19 = scmp.ge.s32.totalorder %s18, 4
      %s25 = sphi 0, %s44
      %s26 = sphi 0, %s40
      %s27 = sphi 0, %s36
      %s28 = sphi 0, %s25
      %s29 = sphi 0, %s26
      %s30 = sphi 0, %s27
      %s31 = sphi 0, %s28
      %s32 = sphi 0, %s29
      %s33 = sphi 0, %s30
      %s49 = sphi 0, %s51
      %s52 = sphi 0, %s49
      %s53 = sphi 0, %s52
      %s69 = sphi 0, %s53
      %s77 = sphi 0, %s79
      %s80 = sphi 0, %s77
      %s81 = sphi 0, %s80
      %s97 = sphi 0, %s81
      %s105 = sphi 0, %s107
      %s108 = sphi 0, %s105
      %s109 = sphi 0, %s108
      %s125 = sphi 0, %s109
      %s133 = sphi 0, %s135
      %s136 = sphi 0, %s133
      %s137 = sphi 0, %s136
      %s153 = sphi 0, %s137
      %s159 = sphi 0, %s161
      %s162 = sphi 0, %s159
      %s163 = sphi 0, %s162
      %s179 = sphi 0, %s163
      %s187 = sphi 0, %s189
      %s190 = sphi 0, %s187
      %s191 = sphi 0, %s190
      %s207 = sphi 0, %s191
      %s211 = sphi 0, %s211
      %s213 = sphi 0, %s211
      %s214 = sphi 0, %s213
      %s228 = sphi 0, %s214
      %s232 = sphi 0, %s232
      %s234 = sphi 0, %s232
      %s235 = sphi 0, %s234
      %s249 = sphi 0, %s235
      %s253 = sphi 0, %s253
      %s255 = sphi 0, %s253
      %s256 = sphi 0, %s255
      %s270 = sphi 0, %s256
      %s278 = sphi 0, %s280
      %s281 = sphi 0, %s278
      %s282 = sphi 0, %s281
      %s298 = sphi 0, %s282
    $region4: #{bag_of_attentions.3} parent=1 // loop_header_branch
      %21 = sbr.rel (%p19) target = $region8
    $region5: #{bag_of_attentions.3} parent=1 // loop_body
      %s23 = ssub.s32 %s18, 1
      %s24 = ssub.s32 %s18, 2
      %s34 = sadd.s32 1, %s27
      %p35 = scmp.ge.s32.totalorder %s34, 1
      %s36 = scalar_select %p35, 0, %s34
      %s37 = sadd.s32 1, %s26
      %s38 = scalar_select %p35, %s37, %s26
      %p39 = scmp.ge.s32.totalorder %s38, 1
      %s40 = scalar_select %p39, 0, %s38
      %s41 = sadd.s32 1, %s25
      %s42 = scalar_select %p39, %s41, %s25
      %p43 = scmp.ge.s32.totalorder %s42, 2
      %s44 = scalar_select %p43, 0, %s42
      %s45 = ssub.s32 %s25, %s44
      %s46 = ssub.s32 %s26, %s40
      %s47 = sor.u32 %s45, %s46
      %p48 = scmp.eq.s32.totalorder %s47, 0
      %s50 = sadd.s32 %s49, 1
      %s51 = scalar_select %p48, %s49, %s50
      %p54 = pneg %p48
      %p55 = scmp.eq.s32.totalorder %s18, 1
      %p56 = por %p54, %p55
      %p57 = scmp.ne.s32.totalorder %s49, %s52
      %p58 = scmp.eq.s32.totalorder %s18, 0
      %p59 = por %p57, %p58
      %p60 = scmp.ne.s32.totalorder %s49, %s52
      %p61 = scmp.eq.s32.totalorder %s23, 1
      %p62 = por %p60, %p61
      %p63 = scmp.ne.s32.totalorder %s52, %s53
      %p64 = scmp.eq.s32.totalorder %s23, 0
      %p65 = por %p63, %p64
      %p66 = scmp.ne.s32.totalorder %s52, %s53
      %p67 = scmp.eq.s32.totalorder %s24, 1
      %p68 = por %p66, %p67
      %p70 = scmp.ne.s32.totalorder %s53, %s69
      %p71 = scmp.eq.s32.totalorder %s24, 0
      %p72 = por %p70, %p71
      %s73 = ssub.s32 %s25, %s44
      %s74 = ssub.s32 %s27, %s36
      %s75 = sor.u32 %s73, %s74
      %p76 = scmp.eq.s32.totalorder %s75, 0
      %s78 = sadd.s32 %s77, 1
      %s79 = scalar_select %p76, %s77, %s78
      %p82 = pneg %p76
      %p83 = scmp.eq.s32.totalorder %s18, 1
      %p84 = por %p82, %p83
      %p85 = scmp.ne.s32.totalorder %s77, %s80
      %p86 = scmp.eq.s32.totalorder %s18, 0
      %p87 = por %p85, %p86
      %p88 = scmp.ne.s32.totalorder %s77, %s80
      %p89 = scmp.eq.s32.totalorder %s23, 1
      %p90 = por %p88, %p89
      %p91 = scmp.ne.s32.totalorder %s80, %s81
      %p92 = scmp.eq.s32.totalorder %s23, 0
      %p93 = por %p91, %p92
      %p94 = scmp.ne.s32.totalorder %s80, %s81
      %p95 = scmp.eq.s32.totalorder %s24, 1
      %p96 = por %p94, %p95
      %p98 = scmp.ne.s32.totalorder %s81, %s97
      %p99 = scmp.eq.s32.totalorder %s24, 0
      %p100 = por %p98, %p99
      %s101 = ssub.s32 %s25, %s44
      %s102 = ssub.s32 %s27, %s36
      %s103 = sor.u32 %s101, %s102
      %p104 = scmp.eq.s32.totalorder %s103, 0
      %s106 = sadd.s32 %s105, 1
      %s107 = scalar_select %p104, %s105, %s106
      %p110 = pneg %p104
      %p111 = scmp.eq.s32.totalorder %s18, 1
      %p112 = por %p110, %p111
      %p113 = scmp.ne.s32.totalorder %s105, %s108
      %p114 = scmp.eq.s32.totalorder %s18, 0
      %p115 = por %p113, %p114
      %p116 = scmp.ne.s32.totalorder %s105, %s108
      %p117 = scmp.eq.s32.totalorder %s23, 1
      %p118 = por %p116, %p117
      %p119 = scmp.ne.s32.totalorder %s108, %s109
      %p120 = scmp.eq.s32.totalorder %s23, 0
      %p121 = por %p119, %p120
      %p122 = scmp.ne.s32.totalorder %s108, %s109
      %p123 = scmp.eq.s32.totalorder %s24, 1
      %p124 = por %p122, %p123
      %p126 = scmp.ne.s32.totalorder %s109, %s125
      %p127 = scmp.eq.s32.totalorder %s24, 0
      %p128 = por %p126, %p127
      %s129 = ssub.s32 %s25, %s44
      %s130 = ssub.s32 %s26, %s40
      %s131 = sor.u32 %s129, %s130
      %p132 = scmp.eq.s32.totalorder %s131, 0
      %s134 = sadd.s32 %s133, 1
      %s135 = scalar_select %p132, %s133, %s134
      %p138 = pneg %p132
      %p139 = scmp.eq.s32.totalorder %s18, 1
      %p140 = por %p138, %p139
      %p141 = scmp.ne.s32.totalorder %s133, %s136
      %p142 = scmp.eq.s32.totalorder %s18, 0
      %p143 = por %p141, %p142
      %p144 = scmp.ne.s32.totalorder %s133, %s136
      %p145 = scmp.eq.s32.totalorder %s23, 1
      %p146 = por %p144, %p145
      %p147 = scmp.ne.s32.totalorder %s136, %s137
      %p148 = scmp.eq.s32.totalorder %s23, 0
      %p149 = por %p147, %p148
      %p150 = scmp.ne.s32.totalorder %s136, %s137
      %p151 = scmp.eq.s32.totalorder %s24, 1
      %p152 = por %p150, %p151
      %p154 = scmp.ne.s32.totalorder %s137, %s153
      %p155 = scmp.eq.s32.totalorder %s24, 0
      %p156 = por %p154, %p155
      %s157 = ssub.s32 %s25, %s44
      %p158 = scmp.eq.s32.totalorder %s157, 0
      %s160 = sadd.s32 %s159, 1
      %s161 = scalar_select %p158, %s159, %s160
      %p164 = pneg %p158
      %p165 = scmp.eq.s32.totalorder %s18, 1
      %p166 = por %p164, %p165
      %p167 = scmp.ne.s32.totalorder %s159, %s162
      %p168 = scmp.eq.s32.totalorder %s18, 0
      %p169 = por %p167, %p168
      %p170 = scmp.ne.s32.totalorder %s159, %s162
      %p171 = scmp.eq.s32.totalorder %s23, 1
      %p172 = por %p170, %p171
      %p173 = scmp.ne.s32.totalorder %s162, %s163
      %p174 = scmp.eq.s32.totalorder %s23, 0
      %p175 = por %p173, %p174
      %p176 = scmp.ne.s32.totalorder %s162, %s163
      %p177 = scmp.eq.s32.totalorder %s24, 1
      %p178 = por %p176, %p177
      %p180 = scmp.ne.s32.totalorder %s163, %s179
      %p181 = scmp.eq.s32.totalorder %s24, 0
      %p182 = por %p180, %p181
      %s183 = ssub.s32 %s25, %s44
      %s184 = ssub.s32 %s26, %s40
      %s185 = sor.u32 %s183, %s184
      %p186 = scmp.eq.s32.totalorder %s185, 0
      %s188 = sadd.s32 %s187, 1
      %s189 = scalar_select %p186, %s187, %s188
      %p192 = pneg %p186
      %p193 = scmp.eq.s32.totalorder %s18, 1
      %p194 = por %p192, %p193
      %p195 = scmp.ne.s32.totalorder %s187, %s190
      %p196 = scmp.eq.s32.totalorder %s18, 0
      %p197 = por %p195, %p196
      %p198 = scmp.ne.s32.totalorder %s187, %s190
      %p199 = scmp.eq.s32.totalorder %s23, 1
      %p200 = por %p198, %p199
      %p201 = scmp.ne.s32.totalorder %s190, %s191
      %p202 = scmp.eq.s32.totalorder %s23, 0
      %p203 = por %p201, %p202
      %p204 = scmp.ne.s32.totalorder %s190, %s191
      %p205 = scmp.eq.s32.totalorder %s24, 1
      %p206 = por %p204, %p205
      %p208 = scmp.ne.s32.totalorder %s191, %s207
      %p209 = scmp.eq.s32.totalorder %s24, 0
      %p210 = por %p208, %p209
      %s212 = sadd.s32 %s211, 1
      %p215 = scmp.eq.s32.totalorder %s18, 1
      %p216 = scmp.ne.s32.totalorder %s211, %s213
      %p217 = scmp.eq.s32.totalorder %s18, 0
      %p218 = por %p216, %p217
      %p219 = scmp.ne.s32.totalorder %s211, %s213
      %p220 = scmp.eq.s32.totalorder %s23, 1
      %p221 = por %p219, %p220
      %p222 = scmp.ne.s32.totalorder %s213, %s214
      %p223 = scmp.eq.s32.totalorder %s23, 0
      %p224 = por %p222, %p223
      %p225 = scmp.ne.s32.totalorder %s213, %s214
      %p226 = scmp.eq.s32.totalorder %s24, 1
      %p227 = por %p225, %p226
      %p229 = scmp.ne.s32.totalorder %s214, %s228
      %p230 = scmp.eq.s32.totalorder %s24, 0
      %p231 = por %p229, %p230
      %s233 = sadd.s32 %s232, 1
      %p236 = scmp.eq.s32.totalorder %s18, 1
      %p237 = scmp.ne.s32.totalorder %s232, %s234
      %p238 = scmp.eq.s32.totalorder %s18, 0
      %p239 = por %p237, %p238
      %p240 = scmp.ne.s32.totalorder %s232, %s234
      %p241 = scmp.eq.s32.totalorder %s23, 1
      %p242 = por %p240, %p241
      %p243 = scmp.ne.s32.totalorder %s234, %s235
      %p244 = scmp.eq.s32.totalorder %s23, 0
      %p245 = por %p243, %p244
      %p246 = scmp.ne.s32.totalorder %s234, %s235
      %p247 = scmp.eq.s32.totalorder %s24, 1
      %p248 = por %p246, %p247
      %p250 = scmp.ne.s32.totalorder %s235, %s249
      %p251 = scmp.eq.s32.totalorder %s24, 0
      %p252 = por %p250, %p251
      %s254 = sadd.s32 %s253, 1
      %p257 = scmp.eq.s32.totalorder %s18, 1
      %p258 = scmp.ne.s32.totalorder %s253, %s255
      %p259 = scmp.eq.s32.totalorder %s18, 0
      %p260 = por %p258, %p259
      %p261 = scmp.ne.s32.totalorder %s253, %s255
      %p262 = scmp.eq.s32.totalorder %s23, 1
      %p263 = por %p261, %p262
      %p264 = scmp.ne.s32.totalorder %s255, %s256
      %p265 = scmp.eq.s32.totalorder %s23, 0
      %p266 = por %p264, %p265
      %p267 = scmp.ne.s32.totalorder %s255, %s256
      %p268 = scmp.eq.s32.totalorder %s24, 1
      %p269 = por %p267, %p268
      %p271 = scmp.ne.s32.totalorder %s256, %s270
      %p272 = scmp.eq.s32.totalorder %s24, 0
      %p273 = por %p271, %p272
      %s274 = ssub.s32 %s25, %s44
      %s275 = ssub.s32 %s26, %s40
      %s276 = sor.u32 %s274, %s275
      %p277 = scmp.eq.s32.totalorder %s276, 0
      %s279 = sadd.s32 %s278, 1
      %s280 = scalar_select %p277, %s278, %s279
      %p283 = pneg %p277
      %p284 = scmp.eq.s32.totalorder %s18, 1
      %p285 = por %p283, %p284
      %p286 = scmp.ne.s32.totalorder %s278, %s281
      %p287 = scmp.eq.s32.totalorder %s18, 0
      %p288 = por %p286, %p287
      %p289 = scmp.ne.s32.totalorder %s278, %s281
      %p290 = scmp.eq.s32.totalorder %s23, 1
      %p291 = por %p289, %p290
      %p292 = scmp.ne.s32.totalorder %s281, %s282
      %p293 = scmp.eq.s32.totalorder %s23, 0
      %p294 = por %p292, %p293
      %p295 = scmp.ne.s32.totalorder %s281, %s282
      %p296 = scmp.eq.s32.totalorder %s24, 1
      %p297 = por %p295, %p296
      %p299 = scmp.ne.s32.totalorder %s282, %s298
      %p300 = scmp.eq.s32.totalorder %s24, 0
      %p301 = por %p299, %p300
      %p302 = scmp.le.s32.totalorder 1, %s18
      %p303 = scmp.lt.s32.totalorder %s18, 3
      %p304 = pnand %p302, %p303
      %p305 = pneg %p304
      // Predicated region
      $region9: #{bag_of_attentions.3} parent=5 // pred_check
        _
      $region10: #{bag_of_attentions.3} parent=5 // pred_check_branch
        %307 = sbr.rel (%p304) target = $region12
      $region11: #{bag_of_attentions.3} parent=5 // pred_region
        %s308 = ssub.s32 %s18, 1
        // Predicated region
        $region13: #{bag_of_attentions.3} parent=11 // pred_check
          %p309 = pneg %p224
        $region14: #{bag_of_attentions.3} parent=11 // pred_check_branch
          %311 = sbr.rel (%p309) target = $region16
        $region15: #{bag_of_attentions.3} parent=11 // pred_region
          _
        $region16: #{bag_of_attentions.3} parent=11 // pred_fallthru
          _
        // Predicated region
        $region17: #{bag_of_attentions.3} parent=11 // pred_check
          %p312 = pneg %p245
        $region18: #{bag_of_attentions.3} parent=11 // pred_check_branch
          %314 = sbr.rel (%p312) target = $region20
        $region19: #{bag_of_attentions.3} parent=11 // pred_region
          _
        $region20: #{bag_of_attentions.3} parent=11 // pred_fallthru
          _
        // Predicated region
        $region21: #{bag_of_attentions.3} parent=11 // pred_check
          %p315 = pneg %p266
        $region22: #{bag_of_attentions.3} parent=11 // pred_check_branch
          %317 = sbr.rel (%p315) target = $region24
        $region23: #{bag_of_attentions.3} parent=11 // pred_region
          _
        $region24: #{bag_of_attentions.3} parent=11 // pred_fallthru
          _
      $region12: #{bag_of_attentions.3} parent=5 // pred_fallthru
        _
      %p318 = scmp.lt.s32.totalorder %s18, 2
      // Predicated region
      $region25: #{bag_of_attentions.3} parent=5 // pred_check
        %p319 = pneg %p318
      $region26: #{bag_of_attentions.3} parent=5 // pred_check_branch
        %321 = sbr.rel (%p319) target = $region28
      $region27: #{bag_of_attentions.3} parent=5 // pred_region
        // Predicated region
        $region29: #{bag_of_attentions.3} parent=27 // pred_check
          %p322 = pneg %p59
        $region30: #{bag_of_attentions.3} parent=27 // pred_check_branch
          %324 = sbr.rel (%p322) target = $region32
        $region31: #{bag_of_attentions.3} parent=27 // pred_region
          %p325 = scmp.lt.s32.totalorder %s25, 1
          %s326 = scalar_select %p325, %s25, 1
          %p327 = scmp.lt.s32.totalorder %s26, 0
          %s328 = scalar_select %p327, %s26, 0
          %s329 = smul.addr %s326, 8
          %s330 = sadd.s32 %s328, %s329
          %s331 = smul.addr %s330, 4
          %s332 = scalar_lea.vmem %s0, %s331
        $region32: #{bag_of_attentions.3} parent=27 // pred_fallthru
          _
        // Predicated region
        $region33: #{bag_of_attentions.3} parent=27 // pred_check
          %p333 = pneg %p87
        $region34: #{bag_of_attentions.3} parent=27 // pred_check_branch
          %335 = sbr.rel (%p333) target = $region36
        $region35: #{bag_of_attentions.3} parent=27 // pred_region
          %p336 = scmp.lt.s32.totalorder %s25, 1
          %s337 = scalar_select %p336, %s25, 1
          %p338 = scmp.lt.s32.totalorder %s27, 0
          %s339 = scalar_select %p338, %s27, 0
          %s340 = smul.addr %s337, 8
          %s341 = sadd.s32 %s339, %s340
          %s342 = smul.addr %s341, 4
          %s343 = scalar_lea.vmem %s1, %s342
        $region36: #{bag_of_attentions.3} parent=27 // pred_fallthru
          _
        // Predicated region
        $region37: #{bag_of_attentions.3} parent=27 // pred_check
          %p344 = pneg %p115
        $region38: #{bag_of_attentions.3} parent=27 // pred_check_branch
          %346 = sbr.rel (%p344) target = $region40
        $region39: #{bag_of_attentions.3} parent=27 // pred_region
          %p347 = scmp.lt.s32.totalorder %s25, 1
          %s348 = scalar_select %p347, %s25, 1
          %p349 = scmp.lt.s32.totalorder %s27, 0
          %s350 = scalar_select %p349, %s27, 0
          %s351 = smul.addr %s348, 8
          %s352 = sadd.s32 %s350, %s351
          %s353 = smul.addr %s352, 4
          %s354 = scalar_lea.vmem %s2, %s353
        $region40: #{bag_of_attentions.3} parent=27 // pred_fallthru
          _
        // Predicated region
        $region41: #{bag_of_attentions.3} parent=27 // pred_check
          %p355 = pneg %p143
        $region42: #{bag_of_attentions.3} parent=27 // pred_check_branch
          %357 = sbr.rel (%p355) target = $region44
        $region43: #{bag_of_attentions.3} parent=27 // pred_region
          %p358 = scmp.lt.s32.totalorder %s25, 1
          %s359 = scalar_select %p358, %s25, 1
          %p360 = scmp.lt.s32.totalorder %s26, 0
          %s361 = scalar_select %p360, %s26, 0
          %s362 = sadd.s32 %s361, %s359
          %s363 = smul.addr %s362, 4
          %s364 = scalar_lea.vmem %s3, %s363
        $region44: #{bag_of_attentions.3} parent=27 // pred_fallthru
          _
        // Predicated region
        $region45: #{bag_of_attentions.3} parent=27 // pred_check
          %p365 = pneg %p169
        $region46: #{bag_of_attentions.3} parent=27 // pred_check_branch
          %367 = sbr.rel (%p365) target = $region48
        $region47: #{bag_of_attentions.3} parent=27 // pred_region
          %p368 = scmp.lt.s32.totalorder %s25, 1
          %s369 = scalar_select %p368, %s25, 1
          %s370 = scalar_lea.vmem %s4, %s369
        $region48: #{bag_of_attentions.3} parent=27 // pred_fallthru
          _
        // Predicated region
        $region49: #{bag_of_attentions.3} parent=27 // pred_check
          %p371 = pneg %p197
        $region50: #{bag_of_attentions.3} parent=27 // pred_check_branch
          %373 = sbr.rel (%p371) target = $region52
        $region51: #{bag_of_attentions.3} parent=27 // pred_region
          %p374 = scmp.lt.s32.totalorder %s25, 1
          %s375 = scalar_select %p374, %s25, 1
          %p376 = scmp.lt.s32.totalorder %s26, 0
          %s377 = scalar_select %p376, %s26, 0
          %s378 = sadd.s32 %s377, %s375
          %s379 = smul.addr %s378, 8
          %s380 = scalar_lea.vmem %s5, %s379
        $region52: #{bag_of_attentions.3} parent=27 // pred_fallthru
          _
      $region28: #{bag_of_attentions.3} parent=5 // pred_fallthru
        _
      %p381 = scmp.le.s32.totalorder 1, %s18
      %p382 = scmp.lt.s32.totalorder %s18, 3
      %p383 = pnand %p381, %p382
      %p384 = pneg %p383
      // Predicated region
      $region53: #{bag_of_attentions.3} parent=5 // pred_check
        _
      $region54: #{bag_of_attentions.3} parent=5 // pred_check_branch
        %386 = sbr.rel (%p383) target = $region56
      $region55: #{bag_of_attentions.3} parent=5 // pred_region
        %s387 = ssub.s32 %s18, 1
        %p388 = scmp.lt.s32.totalorder %s28, 1
        %s389 = scalar_select %p388, %s28, 1
        %p390 = scmp.lt.s32.totalorder %s29, 0
        %s391 = scalar_select %p390, %s29, 0
        %s392 = smul.addr %s389, 8
        %s393 = sadd.s32 %s391, %s392
        %s394 = smul.addr %s393, 4
        %s395 = scalar_lea.vmem %s0, %s394
        %p396 = pneg %p65
        %p397 = pneg %p62
        %p398 = scmp.lt.s32.totalorder %s28, 1
        %s399 = scalar_select %p398, %s28, 1
        %p400 = scmp.lt.s32.totalorder %s30, 0
        %s401 = scalar_select %p400, %s30, 0
        %s402 = smul.addr %s399, 8
        %s403 = sadd.s32 %s401, %s402
        %s404 = smul.addr %s403, 4
        %s405 = scalar_lea.vmem %s1, %s404
        %p406 = pneg %p93
        %p407 = pneg %p90
        %p408 = scmp.lt.s32.totalorder %s28, 1
        %s409 = scalar_select %p408, %s28, 1
        %p410 = scmp.lt.s32.totalorder %s30, 0
        %s411 = scalar_select %p410, %s30, 0
        %s412 = smul.addr %s409, 8
        %s413 = sadd.s32 %s411, %s412
        %s414 = smul.addr %s413, 4
        %s415 = scalar_lea.vmem %s2, %s414
        %p416 = pneg %p121
        %p417 = pneg %p118
        %p418 = scmp.lt.s32.totalorder %s28, 1
        %s419 = scalar_select %p418, %s28, 1
        %p420 = scmp.lt.s32.totalorder %s29, 0
        %s421 = scalar_select %p420, %s29, 0
        %s422 = sadd.s32 %s421, %s419
        %s423 = smul.addr %s422, 4
        %s424 = scalar_lea.vmem %s3, %s423
        %p425 = pneg %p149
        %p426 = pneg %p146
        %p427 = scmp.lt.s32.totalorder %s28, 1
        %s428 = scalar_select %p427, %s28, 1
        %s429 = scalar_lea.vmem %s4, %s428
        %p430 = pneg %p175
        %p431 = pneg %p172
        %p432 = scmp.lt.s32.totalorder %s28, 1
        %s433 = scalar_select %p432, %s28, 1
        %p434 = scmp.lt.s32.totalorder %s29, 0
        %s435 = scalar_select %p434, %s29, 0
        %s436 = sadd.s32 %s435, %s433
        %s437 = smul.addr %s436, 8
        %s438 = scalar_lea.vmem %s5, %s437
        %p439 = pneg %p203
        %p440 = pneg %p200
        %p441 = pneg %p224
        %p442 = pneg %p221
        %p443 = pneg %p245
        %p444 = pneg %p242
        %p445 = pneg %p266
        %p446 = pneg %p263
        %p447 = pneg %p294
        %p448 = pneg %p291
        %s449 = sand.u32 %s281, 1
        %s450 = scalar_lea.sflag [#allocation6], %s449
        %s451 = sand.u32 %s281, 1
        %s452 = smul.addr %s451, 8
        %s453 = scalar_lea.vmem [#allocation5], %s452
        %p454 = scmp.lt.s32.totalorder %s28, 1
        %s455 = scalar_select %p454, %s28, 1
        %p456 = scmp.lt.s32.totalorder %s29, 0
        %s457 = scalar_select %p456, %s29, 0
        %s458 = smul.addr %s455, 8
        %s459 = sadd.s32 %s457, %s458
        %s460 = smul.addr %s459, 4
        %s461 = scalar_lea.vmem %s0, %s460
        %p462 = scmp.lt.s32.totalorder %s28, 1
        %s463 = scalar_select %p462, %s28, 1
        %p464 = scmp.lt.s32.totalorder %s30, 0
        %s465 = scalar_select %p464, %s30, 0
        %s466 = smul.addr %s463, 8
        %s467 = sadd.s32 %s465, %s466
        %s468 = smul.addr %s467, 4
        %s469 = scalar_lea.vmem %s1, %s468
        %p470 = scmp.lt.s32.totalorder %s28, 1
        %s471 = scalar_select %p470, %s28, 1
        %p472 = scmp.lt.s32.totalorder %s30, 0
        %s473 = scalar_select %p472, %s30, 0
        %s474 = smul.addr %s471, 8
        %s475 = sadd.s32 %s473, %s474
        %s476 = smul.addr %s475, 4
        %s477 = scalar_lea.vmem %s2, %s476
        %p478 = scmp.lt.s32.totalorder %s28, 1
        %s479 = scalar_select %p478, %s28, 1
        %p480 = scmp.lt.s32.totalorder %s29, 0
        %s481 = scalar_select %p480, %s29, 0
        %s482 = sadd.s32 %s481, %s479
        %s483 = smul.addr %s482, 4
        %s484 = scalar_lea.vmem %s3, %s483
        %p485 = scmp.lt.s32.totalorder %s28, 1
        %s486 = scalar_select %p485, %s28, 1
        %s487 = scalar_lea.vmem %s4, %s486
        %p488 = scmp.lt.s32.totalorder %s28, 1
        %s489 = scalar_select %p488, %s28, 1
        %p490 = scmp.lt.s32.totalorder %s29, 0
        %s491 = scalar_select %p490, %s29, 0
        %s492 = sadd.s32 %s491, %s489
        %s493 = smul.addr %s492, 8
        %s494 = scalar_lea.vmem %s5, %s493
        %p496 = scmp.eq.s32.totalorder %s30, 0
        // Predicated region
        $region57: #{bag_of_attentions.3} parent=55 // pred_check
          %p497 = pneg %p496
        $region58: #{bag_of_attentions.3} parent=55 // pred_check_branch
          %499 = sbr.rel (%p497) target = $region60
        $region59: #{bag_of_attentions.3} parent=55 // pred_region
          %vm500 = vcmask 7168
          %501 = vst.msk [vmem:[#allocation2] sm:$0xff] %vm500, -inf
          %502 = vst.msk [vmem:[#allocation2 + $0x8] sm:$0xff] %vm500, -inf
          %503 = vst.msk [vmem:[#allocation2 + $0x10] sm:$0xff] %vm500, -inf
          %504 = vst.msk [vmem:[#allocation2 + $0x18] sm:$0xff] %vm500, -inf
          %505 = vst.msk [vmem:[#allocation2 + $0x20] sm:$0xff] %vm500, -inf
          %506 = vst.msk [vmem:[#allocation2 + $0x28] sm:$0xff] %vm500, -inf
          %507 = vst.msk [vmem:[#allocation2 + $0x30] sm:$0xff] %vm500, -inf
          %508 = vst.msk [vmem:[#allocation2 + $0x38] sm:$0xff] %vm500, -inf
          %509 = vst.msk [vmem:[#allocation3] sm:$0xff] %vm500, 0.0
          %510 = vst.msk [vmem:[#allocation3 + $0x8] sm:$0xff] %vm500, 0.0
          %511 = vst.msk [vmem:[#allocation3 + $0x10] sm:$0xff] %vm500, 0.0
          %512 = vst.msk [vmem:[#allocation3 + $0x18] sm:$0xff] %vm500, 0.0
          %513 = vst.msk [vmem:[#allocation3 + $0x20] sm:$0xff] %vm500, 0.0
          %514 = vst.msk [vmem:[#allocation3 + $0x28] sm:$0xff] %vm500, 0.0
          %515 = vst.msk [vmem:[#allocation3 + $0x30] sm:$0xff] %vm500, 0.0
          %516 = vst.msk [vmem:[#allocation3 + $0x38] sm:$0xff] %vm500, 0.0
          %vm517 = vcmask 31744
          %518 = vst.msk [vmem:[#allocation4] sm:$0xff] %vm517, 0.0
          %519 = vst.msk [vmem:[#allocation4 + $0x8] sm:$0xff] %vm517, 0.0
          %520 = vst.msk [vmem:[#allocation4 + $0x10] sm:$0xff] %vm517, 0.0
          %521 = vst.msk [vmem:[#allocation4 + $0x18] sm:$0xff] %vm517, 0.0
          %522 = vst.msk [vmem:[#allocation4 + $0x20] sm:$0xff] %vm517, 0.0
          %523 = vst.msk [vmem:[#allocation4 + $0x28] sm:$0xff] %vm517, 0.0
          %524 = vst.msk [vmem:[#allocation4 + $0x30] sm:$0xff] %vm517, 0.0
          %525 = vst.msk [vmem:[#allocation4 + $0x38] sm:$0xff] %vm517, 0.0
        $region60: #{bag_of_attentions.3} parent=55 // pred_fallthru
          _
        %v526 = vld [vmem:[%s461] sm:$0xf]
        %v527 = vld [vmem:[%s461 + $0x4] sm:$0xf]
        %v528 = vld [vmem:[%s461 + $0x8] sm:$0xf]
        %v529 = vld [vmem:[%s461 + $0xc] sm:$0xf]
        %v530 = vld [vmem:[%s461 + $0x10] sm:$0xf]
        %v531 = vld [vmem:[%s461 + $0x14] sm:$0xf]
        %v532 = vld [vmem:[%s461 + $0x18] sm:$0xf]
        %v533 = vld [vmem:[%s461 + $0x1c] sm:$0xf]
        %v534 = vld [vmem:[%s469] sm:$0xf]
        %v535 = vld [vmem:[%s469 + $0x4] sm:$0xf]
        %v536 = vld [vmem:[%s469 + $0x8] sm:$0xf]
        %v537 = vld [vmem:[%s469 + $0xc] sm:$0xf]
        %v538 = vld [vmem:[%s469 + $0x10] sm:$0xf]
        %v539 = vld [vmem:[%s469 + $0x14] sm:$0xf]
        %v540 = vld [vmem:[%s469 + $0x18] sm:$0xf]
        %v541 = vld [vmem:[%s469 + $0x1c] sm:$0xf]
        %v542 = vld [vmem:[%s477] sm:$0xf]
        %v543 = vld [vmem:[%s477 + $0x4] sm:$0xf]
        %v544 = vld [vmem:[%s477 + $0x8] sm:$0xf]
        %v545 = vld [vmem:[%s477 + $0xc] sm:$0xf]
        %v546 = vld [vmem:[%s477 + $0x10] sm:$0xf]
        %v547 = vld [vmem:[%s477 + $0x14] sm:$0xf]
        %v548 = vld [vmem:[%s477 + $0x18] sm:$0xf]
        %v549 = vld [vmem:[%s477 + $0x1c] sm:$0xf]
        %vm550 = vcmask 31744
        %v552 = vsel %vm550, %v526, 0
        %v555 = vsel %vm550, %v534, 0
        %557 = vmatprep.subr.bf16.mxu0 0
        %558 = vmatpush1.bf16.xpose.msra.mxu0 %v555
        %559 = vmatprep.subr.bf16.mxu0 0
        %560 = vmatpush1.bf16.xpose.msra.mxu0 0
        %561 = vmatprep.subr.bf16.mxu0 0
        %562 = vmatpush1.bf16.xpose.msra.mxu0 0
        %563 = vmatprep.subr.bf16.mxu0 0
        %564 = vmatpush1.bf16.xpose.msra.mxu0 0
        %565 = vmatprep.subr.bf16.mxu0 0
        %566 = vmatpush1.bf16.xpose.msra.mxu0 0
        %567 = vmatprep.subr.bf16.mxu0 0
        %568 = vmatpush1.bf16.xpose.msra.mxu0 0
        %569 = vmatprep.subr.bf16.mxu0 0
        %570 = vmatpush1.bf16.xpose.msra.mxu0 0
        %571 = vmatprep.subr.bf16.mxu0 0
        %572 = vmatpush1.bf16.xpose.msra.mxu0 0
        %573 = vmatprep.subr.bf16.mxu0 0
        %574 = vmatpush1.bf16.xpose.msra.mxu0 0
        %575 = vmatprep.subr.bf16.mxu0 0
        %576 = vmatpush1.bf16.xpose.msra.mxu0 0
        %577 = vmatprep.subr.bf16.mxu0 0
        %578 = vmatpush1.bf16.xpose.msra.mxu0 0
        %579 = vmatprep.subr.bf16.mxu0 0
        %580 = vmatpush1.bf16.xpose.msra.mxu0 0
        %581 = vmatprep.subr.bf16.mxu0 0
        %582 = vmatpush1.bf16.xpose.msra.mxu0 0
        %583 = vmatprep.subr.bf16.mxu0 0
        %584 = vmatpush1.bf16.xpose.msra.mxu0 0
        %585 = vmatprep.subr.bf16.mxu0 0
        %586 = vmatpush1.bf16.xpose.msra.mxu0 0
        %587 = vmatprep.subr.bf16.mxu0 0
        %588 = vmatpush1.bf16.xpose.msra.mxu0 0
        %589 = vmatprep.mubr.bf16.mxu0 0
        %590 = vmatmul.mubr.bf16.gmra.mrb[0].mxu0 %v552
        %v591 = vpop.f32.mrb[0].mxu0
        %v592 = vadd.f32 0.0, %v591
        %v593 = vpop.f32.mrb[0].mxu0
        %v594 = vpop.f32.mrb[0].mxu0
        %v595 = vpop.f32.mrb[0].mxu0
        %596 = vdwg.mxu0
        %v598 = vsel %vm550, %v527, 0
        %v601 = vsel %vm550, %v535, 0
        %603 = vmatprep.subr.bf16.mxu0 0
        %604 = vmatpush1.bf16.xpose.msra.mxu0 %v601
        %605 = vmatprep.subr.bf16.mxu0 0
        %606 = vmatpush1.bf16.xpose.msra.mxu0 0
        %607 = vmatprep.subr.bf16.mxu0 0
        %608 = vmatpush1.bf16.xpose.msra.mxu0 0
        %609 = vmatprep.subr.bf16.mxu0 0
        %610 = vmatpush1.bf16.xpose.msra.mxu0 0
        %611 = vmatprep.subr.bf16.mxu0 0
        %612 = vmatpush1.bf16.xpose.msra.mxu0 0
        %613 = vmatprep.subr.bf16.mxu0 0
        %614 = vmatpush1.bf16.xpose.msra.mxu0 0
        %615 = vmatprep.subr.bf16.mxu0 0
        %616 = vmatpush1.bf16.xpose.msra.mxu0 0
        %617 = vmatprep.subr.bf16.mxu0 0
        %618 = vmatpush1.bf16.xpose.msra.mxu0 0
        %619 = vmatprep.subr.bf16.mxu0 0
        %620 = vmatpush1.bf16.xpose.msra.mxu0 0
        %621 = vmatprep.subr.bf16.mxu0 0
        %622 = vmatpush1.bf16.xpose.msra.mxu0 0
        %623 = vmatprep.subr.bf16.mxu0 0
        %624 = vmatpush1.bf16.xpose.msra.mxu0 0
        %625 = vmatprep.subr.bf16.mxu0 0
        %626 = vmatpush1.bf16.xpose.msra.mxu0 0
        %627 = vmatprep.subr.bf16.mxu0 0
        %628 = vmatpush1.bf16.xpose.msra.mxu0 0
        %629 = vmatprep.subr.bf16.mxu0 0
        %630 = vmatpush1.bf16.xpose.msra.mxu0 0
        %631 = vmatprep.subr.bf16.mxu0 0
        %632 = vmatpush1.bf16.xpose.msra.mxu0 0
        %633 = vmatprep.subr.bf16.mxu0 0
        %634 = vmatpush1.bf16.xpose.msra.mxu0 0
        %635 = vmatprep.mubr.bf16.mxu0 0
        %636 = vmatmul.mubr.bf16.gmra.mrb[0].mxu0 %v598
        %v637 = vpop.f32.mrb[0].mxu0
        %v638 = vadd.f32 0.0, %v637
        %v639 = vpop.f32.mrb[0].mxu0
        %v640 = vpop.f32.mrb[0].mxu0
        %v641 = vpop.f32.mrb[0].mxu0
        %642 = vdwg.mxu0
        %v644 = vsel %vm550, %v528, 0
        %v647 = vsel %vm550, %v536, 0
        %649 = vmatprep.subr.bf16.mxu0 0
        %650 = vmatpush1.bf16.xpose.msra.mxu0 %v647
        %651 = vmatprep.subr.bf16.mxu0 0
        %652 = vmatpush1.bf16.xpose.msra.mxu0 0
        %653 = vmatprep.subr.bf16.mxu0 0
        %654 = vmatpush1.bf16.xpose.msra.mxu0 0
        %655 = vmatprep.subr.bf16.mxu0 0
        %656 = vmatpush1.bf16.xpose.msra.mxu0 0
        %657 = vmatprep.subr.bf16.mxu0 0
        %658 = vmatpush1.bf16.xpose.msra.mxu0 0
        %659 = vmatprep.subr.bf16.mxu0 0
        %660 = vmatpush1.bf16.xpose.msra.mxu0 0
        %661 = vmatprep.subr.bf16.mxu0 0
        %662 = vmatpush1.bf16.xpose.msra.mxu0 0
        %663 = vmatprep.subr.bf16.mxu0 0
        %664 = vmatpush1.bf16.xpose.msra.mxu0 0
        %665 = vmatprep.subr.bf16.mxu0 0
        %666 = vmatpush1.bf16.xpose.msra.mxu0 0
        %667 = vmatprep.subr.bf16.mxu0 0
        %668 = vmatpush1.bf16.xpose.msra.mxu0 0
        %669 = vmatprep.subr.bf16.mxu0 0
        %670 = vmatpush1.bf16.xpose.msra.mxu0 0
        %671 = vmatprep.subr.bf16.mxu0 0
        %672 = vmatpush1.bf16.xpose.msra.mxu0 0
        %673 = vmatprep.subr.bf16.mxu0 0
        %674 = vmatpush1.bf16.xpose.msra.mxu0 0
        %675 = vmatprep.subr.bf16.mxu0 0
        %676 = vmatpush1.bf16.xpose.msra.mxu0 0
        %677 = vmatprep.subr.bf16.mxu0 0
        %678 = vmatpush1.bf16.xpose.msra.mxu0 0
        %679 = vmatprep.subr.bf16.mxu0 0
        %680 = vmatpush1.bf16.xpose.msra.mxu0 0
        %681 = vmatprep.mubr.bf16.mxu0 0
        %682 = vmatmul.mubr.bf16.gmra.mrb[0].mxu0 %v644
        %v683 = vpop.f32.mrb[0].mxu0
        %v684 = vadd.f32 0.0, %v683
        %v685 = vpop.f32.mrb[0].mxu0
        %v686 = vpop.f32.mrb[0].mxu0
        %v687 = vpop.f32.mrb[0].mxu0
        %688 = vdwg.mxu0
        %v690 = vsel %vm550, %v529, 0
        %v693 = vsel %vm550, %v537, 0
        %695 = vmatprep.subr.bf16.mxu0 0
        %696 = vmatpush1.bf16.xpose.msra.mxu0 %v693
        %697 = vmatprep.subr.bf16.mxu0 0
        %698 = vmatpush1.bf16.xpose.msra.mxu0 0
        %699 = vmatprep.subr.bf16.mxu0 0
        %700 = vmatpush1.bf16.xpose.msra.mxu0 0
        %701 = vmatprep.subr.bf16.mxu0 0
        %702 = vmatpush1.bf16.xpose.msra.mxu0 0
        %703 = vmatprep.subr.bf16.mxu0 0
        %704 = vmatpush1.bf16.xpose.msra.mxu0 0
        %705 = vmatprep.subr.bf16.mxu0 0
        %706 = vmatpush1.bf16.xpose.msra.mxu0 0
        %707 = vmatprep.subr.bf16.mxu0 0
        %708 = vmatpush1.bf16.xpose.msra.mxu0 0
        %709 = vmatprep.subr.bf16.mxu0 0
        %710 = vmatpush1.bf16.xpose.msra.mxu0 0
        %711 = vmatprep.subr.bf16.mxu0 0
        %712 = vmatpush1.bf16.xpose.msra.mxu0 0
        %713 = vmatprep.subr.bf16.mxu0 0
        %714 = vmatpush1.bf16.xpose.msra.mxu0 0
        %715 = vmatprep.subr.bf16.mxu0 0
        %716 = vmatpush1.bf16.xpose.msra.mxu0 0
        %717 = vmatprep.subr.bf16.mxu0 0
        %718 = vmatpush1.bf16.xpose.msra.mxu0 0
        %719 = vmatprep.subr.bf16.mxu0 0
        %720 = vmatpush1.bf16.xpose.msra.mxu0 0
        %721 = vmatprep.subr.bf16.mxu0 0
        %722 = vmatpush1.bf16.xpose.msra.mxu0 0
        %723 = vmatprep.subr.bf16.mxu0 0
        %724 = vmatpush1.bf16.xpose.msra.mxu0 0
        %725 = vmatprep.subr.bf16.mxu0 0
        %726 = vmatpush1.bf16.xpose.msra.mxu0 0
        %727 = vmatprep.mubr.bf16.mxu0 0
        %728 = vmatmul.mubr.bf16.gmra.mrb[0].mxu0 %v690
        %v729 = vpop.f32.mrb[0].mxu0
        %v730 = vadd.f32 0.0, %v729
        %v731 = vpop.f32.mrb[0].mxu0
        %v732 = vpop.f32.mrb[0].mxu0
        %v733 = vpop.f32.mrb[0].mxu0
        %734 = vdwg.mxu0
        %v736 = vsel %vm550, %v530, 0
        %v739 = vsel %vm550, %v538, 0
        %741 = vmatprep.subr.bf16.mxu0 0
        %742 = vmatpush1.bf16.xpose.msra.mxu0 %v739
        %743 = vmatprep.subr.bf16.mxu0 0
        %744 = vmatpush1.bf16.xpose.msra.mxu0 0
        %745 = vmatprep.subr.bf16.mxu0 0
        %746 = vmatpush1.bf16.xpose.msra.mxu0 0
        %747 = vmatprep.subr.bf16.mxu0 0
        %748 = vmatpush1.bf16.xpose.msra.mxu0 0
        %749 = vmatprep.subr.bf16.mxu0 0
        %750 = vmatpush1.bf16.xpose.msra.mxu0 0
        %751 = vmatprep.subr.bf16.mxu0 0
        %752 = vmatpush1.bf16.xpose.msra.mxu0 0
        %753 = vmatprep.subr.bf16.mxu0 0
        %754 = vmatpush1.bf16.xpose.msra.mxu0 0
        %755 = vmatprep.subr.bf16.mxu0 0
        %756 = vmatpush1.bf16.xpose.msra.mxu0 0
        %757 = vmatprep.subr.bf16.mxu0 0
        %758 = vmatpush1.bf16.xpose.msra.mxu0 0
        %759 = vmatprep.subr.bf16.mxu0 0
        %760 = vmatpush1.bf16.xpose.msra.mxu0 0
        %761 = vmatprep.subr.bf16.mxu0 0
        %762 = vmatpush1.bf16.xpose.msra.mxu0 0
        %763 = vmatprep.subr.bf16.mxu0 0
        %764 = vmatpush1.bf16.xpose.msra.mxu0 0
        %765 = vmatprep.subr.bf16.mxu0 0
        %766 = vmatpush1.bf16.xpose.msra.mxu0 0
        %767 = vmatprep.subr.bf16.mxu0 0
        %768 = vmatpush1.bf16.xpose.msra.mxu0 0
        %769 = vmatprep.subr.bf16.mxu0 0
        %770 = vmatpush1.bf16.xpose.msra.mxu0 0
        %771 = vmatprep.subr.bf16.mxu0 0
        %772 = vmatpush1.bf16.xpose.msra.mxu0 0
        %773 = vmatprep.mubr.bf16.mxu0 0
        %774 = vmatmul.mubr.bf16.gmra.mrb[0].mxu0 %v736
        %v775 = vpop.f32.mrb[0].mxu0
        %v776 = vadd.f32 0.0, %v775
        %v777 = vpop.f32.mrb[0].mxu0
        %v778 = vpop.f32.mrb[0].mxu0
        %v779 = vpop.f32.mrb[0].mxu0
        %780 = vdwg.mxu0
        %v782 = vsel %vm550, %v531, 0
        %v785 = vsel %vm550, %v539, 0
        %787 = vmatprep.subr.bf16.mxu0 0
        %788 = vmatpush1.bf16.xpose.msra.mxu0 %v785
        %789 = vmatprep.subr.bf16.mxu0 0
        %790 = vmatpush1.bf16.xpose.msra.mxu0 0
        %791 = vmatprep.subr.bf16.mxu0 0
        %792 = vmatpush1.bf16.xpose.msra.mxu0 0
        %793 = vmatprep.subr.bf16.mxu0 0
        %794 = vmatpush1.bf16.xpose.msra.mxu0 0
        %795 = vmatprep.subr.bf16.mxu0 0
        %796 = vmatpush1.bf16.xpose.msra.mxu0 0
        %797 = vmatprep.subr.bf16.mxu0 0
        %798 = vmatpush1.bf16.xpose.msra.mxu0 0
        %799 = vmatprep.subr.bf16.mxu0 0
        %800 = vmatpush1.bf16.xpose.msra.mxu0 0
        %801 = vmatprep.subr.bf16.mxu0 0
        %802 = vmatpush1.bf16.xpose.msra.mxu0 0
        %803 = vmatprep.subr.bf16.mxu0 0
        %804 = vmatpush1.bf16.xpose.msra.mxu0 0
        %805 = vmatprep.subr.bf16.mxu0 0
        %806 = vmatpush1.bf16.xpose.msra.mxu0 0
        %807 = vmatprep.subr.bf16.mxu0 0
        %808 = vmatpush1.bf16.xpose.msra.mxu0 0
        %809 = vmatprep.subr.bf16.mxu0 0
        %810 = vmatpush1.bf16.xpose.msra.mxu0 0
        %811 = vmatprep.subr.bf16.mxu0 0
        %812 = vmatpush1.bf16.xpose.msra.mxu0 0
        %813 = vmatprep.subr.bf16.mxu0 0
        %814 = vmatpush1.bf16.xpose.msra.mxu0 0
        %815 = vmatprep.subr.bf16.mxu0 0
        %816 = vmatpush1.bf16.xpose.msra.mxu0 0
        %817 = vmatprep.subr.bf16.mxu0 0
        %818 = vmatpush1.bf16.xpose.msra.mxu0 0
        %819 = vmatprep.mubr.bf16.mxu0 0
        %820 = vmatmul.mubr.bf16.gmra.mrb[0].mxu0 %v782
        %v821 = vpop.f32.mrb[0].mxu0
        %v822 = vadd.f32 0.0, %v821
        %v823 = vpop.f32.mrb[0].mxu0
        %v824 = vpop.f32.mrb[0].mxu0
        %v825 = vpop.f32.mrb[0].mxu0
        %826 = vdwg.mxu0
        %v828 = vsel %vm550, %v532, 0
        %v831 = vsel %vm550, %v540, 0
        %833 = vmatprep.subr.bf16.mxu0 0
        %834 = vmatpush1.bf16.xpose.msra.mxu0 %v831
        %835 = vmatprep.subr.bf16.mxu0 0
        %836 = vmatpush1.bf16.xpose.msra.mxu0 0
        %837 = vmatprep.subr.bf16.mxu0 0
        %838 = vmatpush1.bf16.xpose.msra.mxu0 0
        %839 = vmatprep.subr.bf16.mxu0 0
        %840 = vmatpush1.bf16.xpose.msra.mxu0 0
        %841 = vmatprep.subr.bf16.mxu0 0
        %842 = vmatpush1.bf16.xpose.msra.mxu0 0
        %843 = vmatprep.subr.bf16.mxu0 0
        %844 = vmatpush1.bf16.xpose.msra.mxu0 0
        %845 = vmatprep.subr.bf16.mxu0 0
        %846 = vmatpush1.bf16.xpose.msra.mxu0 0
        %847 = vmatprep.subr.bf16.mxu0 0
        %848 = vmatpush1.bf16.xpose.msra.mxu0 0
        %849 = vmatprep.subr.bf16.mxu0 0
        %850 = vmatpush1.bf16.xpose.msra.mxu0 0
        %851 = vmatprep.subr.bf16.mxu0 0
        %852 = vmatpush1.bf16.xpose.msra.mxu0 0
        %853 = vmatprep.subr.bf16.mxu0 0
        %854 = vmatpush1.bf16.xpose.msra.mxu0 0
        %855 = vmatprep.subr.bf16.mxu0 0
        %856 = vmatpush1.bf16.xpose.msra.mxu0 0
        %857 = vmatprep.subr.bf16.mxu0 0
        %858 = vmatpush1.bf16.xpose.msra.mxu0 0
        %859 = vmatprep.subr.bf16.mxu0 0
        %860 = vmatpush1.bf16.xpose.msra.mxu0 0
        %861 = vmatprep.subr.bf16.mxu0 0
        %862 = vmatpush1.bf16.xpose.msra.mxu0 0
        %863 = vmatprep.subr.bf16.mxu0 0
        %864 = vmatpush1.bf16.xpose.msra.mxu0 0
        %865 = vmatprep.mubr.bf16.mxu0 0
        %866 = vmatmul.mubr.bf16.gmra.mrb[0].mxu0 %v828
        %v867 = vpop.f32.mrb[0].mxu0
        %v868 = vadd.f32 0.0, %v867
        %v869 = vpop.f32.mrb[0].mxu0
        %v870 = vpop.f32.mrb[0].mxu0
        %v871 = vpop.f32.mrb[0].mxu0
        %872 = vdwg.mxu0
        %v874 = vsel %vm550, %v533, 0
        %v877 = vsel %vm550, %v541, 0
        %879 = vmatprep.subr.bf16.mxu0 0
        %880 = vmatpush1.bf16.xpose.msra.mxu0 %v877
        %881 = vmatprep.subr.bf16.mxu0 0
        %882 = vmatpush1.bf16.xpose.msra.mxu0 0
        %883 = vmatprep.subr.bf16.mxu0 0
        %884 = vmatpush1.bf16.xpose.msra.mxu0 0
        %885 = vmatprep.subr.bf16.mxu0 0
        %886 = vmatpush1.bf16.xpose.msra.mxu0 0
        %887 = vmatprep.subr.bf16.mxu0 0
        %888 = vmatpush1.bf16.xpose.msra.mxu0 0
        %889 = vmatprep.subr.bf16.mxu0 0
        %890 = vmatpush1.bf16.xpose.msra.mxu0 0
        %891 = vmatprep.subr.bf16.mxu0 0
        %892 = vmatpush1.bf16.xpose.msra.mxu0 0
        %893 = vmatprep.subr.bf16.mxu0 0
        %894 = vmatpush1.bf16.xpose.msra.mxu0 0
        %895 = vmatprep.subr.bf16.mxu0 0
        %896 = vmatpush1.bf16.xpose.msra.mxu0 0
        %897 = vmatprep.subr.bf16.mxu0 0
        %898 = vmatpush1.bf16.xpose.msra.mxu0 0
        %899 = vmatprep.subr.bf16.mxu0 0
        %900 = vmatpush1.bf16.xpose.msra.mxu0 0
        %901 = vmatprep.subr.bf16.mxu0 0
        %902 = vmatpush1.bf16.xpose.msra.mxu0 0
        %903 = vmatprep.subr.bf16.mxu0 0
        %904 = vmatpush1.bf16.xpose.msra.mxu0 0
        %905 = vmatprep.subr.bf16.mxu0 0
        %906 = vmatpush1.bf16.xpose.msra.mxu0 0
        %907 = vmatprep.subr.bf16.mxu0 0
        %908 = vmatpush1.bf16.xpose.msra.mxu0 0
        %909 = vmatprep.subr.bf16.mxu0 0
        %910 = vmatpush1.bf16.xpose.msra.mxu0 0
        %911 = vmatprep.mubr.bf16.mxu0 0
        %912 = vmatmul.mubr.bf16.gmra.mrb[0].mxu0 %v874
        %v913 = vpop.f32.mrb[0].mxu0
        %v914 = vadd.f32 0.0, %v913
        %v915 = vpop.f32.mrb[0].mxu0
        %v916 = vpop.f32.mrb[0].mxu0
        %v917 = vpop.f32.mrb[0].mxu0
        %918 = vdwg.mxu0
        %v919 = vld [vmem:[#allocation2] sm:$0xff]
        %v920 = vld [vmem:[#allocation2 + $0x8] sm:$0xff]
        %v921 = vld [vmem:[#allocation2 + $0x10] sm:$0xff]
        %v922 = vld [vmem:[#allocation2 + $0x18] sm:$0xff]
        %v923 = vld [vmem:[#allocation2 + $0x20] sm:$0xff]
        %v924 = vld [vmem:[#allocation2 + $0x28] sm:$0xff]
        %v925 = vld [vmem:[#allocation2 + $0x30] sm:$0xff]
        %v926 = vld [vmem:[#allocation2 + $0x38] sm:$0xff]
        %vm927 = vcmask 64512
        %v928 = vsel %vm927, %v592, -inf
        %929 = vmax.xlane.f32.xlu0 %v928
        %v930 = vpop.xlane.xlu0 %929
        %v931 = vsel %vm927, %v638, -inf
        %932 = vmax.xlane.f32.xlu0 %v931
        %v933 = vpop.xlane.xlu0 %932
        %v934 = vsel %vm927, %v684, -inf
        %935 = vmax.xlane.f32.xlu0 %v934
        %v936 = vpop.xlane.xlu0 %935
        %v937 = vsel %vm927, %v730, -inf
        %938 = vmax.xlane.f32.xlu0 %v937
        %v939 = vpop.xlane.xlu0 %938
        %v940 = vsel %vm927, %v776, -inf
        %941 = vmax.xlane.f32.xlu0 %v940
        %v942 = vpop.xlane.xlu0 %941
        %v943 = vsel %vm927, %v822, -inf
        %944 = vmax.xlane.f32.xlu0 %v943
        %v945 = vpop.xlane.xlu0 %944
        %v946 = vsel %vm927, %v868, -inf
        %947 = vmax.xlane.f32.xlu0 %v946
        %v948 = vpop.xlane.xlu0 %947
        %v949 = vsel %vm927, %v914, -inf
        %950 = vmax.xlane.f32.xlu0 %v949
        %v951 = vpop.xlane.xlu0 %950
        %v952 = vmax.f32 %v919, %v930
        %v953 = vmax.f32 %v920, %v933
        %v954 = vmax.f32 %v921, %v936
        %v955 = vmax.f32 %v922, %v939
        %v956 = vmax.f32 %v923, %v942
        %v957 = vmax.f32 %v924, %v945
        %v958 = vmax.f32 %v925, %v948
        %v959 = vmax.f32 %v926, %v951
        %v960 = vsub.f32 %v919, %v952
        %v961 = vsub.f32 %v920, %v953
        %v962 = vsub.f32 %v921, %v954
        %v963 = vsub.f32 %v922, %v955
        %v964 = vsub.f32 %v923, %v956
        %v965 = vsub.f32 %v924, %v957
        %v966 = vsub.f32 %v925, %v958
        %v967 = vsub.f32 %v926, %v959
        %v968 = vmul.f32 %v960, 1.442695
        %v969 = vpow.pop %v968
        %v970 = vmul.f32 %v961, 1.442695
        %v971 = vpow.pop %v970
        %v972 = vmul.f32 %v962, 1.442695
        %v973 = vpow.pop %v972
        %v974 = vmul.f32 %v963, 1.442695
        %v975 = vpow.pop %v974
        %v976 = vmul.f32 %v964, 1.442695
        %v977 = vpow.pop %v976
        %v978 = vmul.f32 %v965, 1.442695
        %v979 = vpow.pop %v978
        %v980 = vmul.f32 %v966, 1.442695
        %v981 = vpow.pop %v980
        %v982 = vmul.f32 %v967, 1.442695
        %v983 = vpow.pop %v982
        %985 = vset.pattern.permute.xlu0 0
        %986 = vperm.xlu0 %985, %v952
        %v987 = vpop.permute.xlu0 %986
        %990 = vset.pattern.permute.xlu0 0
        %991 = vperm.xlu0 %990, %v953
        %v992 = vpop.permute.xlu0 %991
        %995 = vset.pattern.permute.xlu0 0
        %996 = vperm.xlu0 %995, %v954
        %v997 = vpop.permute.xlu0 %996
        %1000 = vset.pattern.permute.xlu0 0
        %1001 = vperm.xlu0 %1000, %v955
        %v1002 = vpop.permute.xlu0 %1001
        %1005 = vset.pattern.permute.xlu0 0
        %1006 = vperm.xlu0 %1005, %v956
        %v1007 = vpop.permute.xlu0 %1006
        %1010 = vset.pattern.permute.xlu0 0
        %1011 = vperm.xlu0 %1010, %v957
        %v1012 = vpop.permute.xlu0 %1011
        %1015 = vset.pattern.permute.xlu0 0
        %1016 = vperm.xlu0 %1015, %v958
        %v1017 = vpop.permute.xlu0 %1016
        %1020 = vset.pattern.permute.xlu0 0
        %1021 = vperm.xlu0 %1020, %v959
        %v1022 = vpop.permute.xlu0 %1021
        %v1024 = vsub.f32 %v592, %v987
        %v1025 = vsub.f32 %v638, %v992
        %v1026 = vsub.f32 %v684, %v997
        %v1027 = vsub.f32 %v730, %v1002
        %v1028 = vsub.f32 %v776, %v1007
        %v1029 = vsub.f32 %v822, %v1012
        %v1030 = vsub.f32 %v868, %v1017
        %v1031 = vsub.f32 %v914, %v1022
        %v1032 = vmul.f32 %v1024, 1.442695
        %v1033 = vpow.pop %v1032
        %v1034 = vmul.f32 %v1025, 1.442695
        %v1035 = vpow.pop %v1034
        %v1036 = vmul.f32 %v1026, 1.442695
        %v1037 = vpow.pop %v1036
        %v1038 = vmul.f32 %v1027, 1.442695
        %v1039 = vpow.pop %v1038
        %v1040 = vmul.f32 %v1028, 1.442695
        %v1041 = vpow.pop %v1040
        %v1042 = vmul.f32 %v1029, 1.442695
        %v1043 = vpow.pop %v1042
        %v1044 = vmul.f32 %v1030, 1.442695
        %v1045 = vpow.pop %v1044
        %v1046 = vmul.f32 %v1031, 1.442695
        %v1047 = vpow.pop %v1046
        %v1048 = vld [vmem:[#allocation3] sm:$0xff]
        %v1049 = vld [vmem:[#allocation3 + $0x8] sm:$0xff]
        %v1050 = vld [vmem:[#allocation3 + $0x10] sm:$0xff]
        %v1051 = vld [vmem:[#allocation3 + $0x18] sm:$0xff]
        %v1052 = vld [vmem:[#allocation3 + $0x20] sm:$0xff]
        %v1053 = vld [vmem:[#allocation3 + $0x28] sm:$0xff]
        %v1054 = vld [vmem:[#allocation3 + $0x30] sm:$0xff]
        %v1055 = vld [vmem:[#allocation3 + $0x38] sm:$0xff]
        %v1056 = vmul.f32 %v969, %v1048
        %v1057 = vmul.f32 %v971, %v1049
        %v1058 = vmul.f32 %v973, %v1050
        %v1059 = vmul.f32 %v975, %v1051
        %v1060 = vmul.f32 %v977, %v1052
        %v1061 = vmul.f32 %v979, %v1053
        %v1062 = vmul.f32 %v981, %v1054
        %v1063 = vmul.f32 %v983, %v1055
        %v1064 = vsel %vm927, %v1033, 0.0
        %1065 = vadd.xlane.f32.xlu0 %v1064
        %v1066 = vpop.xlane.xlu0 %1065
        %v1067 = vsel %vm927, %v1035, 0.0
        %1068 = vadd.xlane.f32.xlu0 %v1067
        %v1069 = vpop.xlane.xlu0 %1068
        %v1070 = vsel %vm927, %v1037, 0.0
        %1071 = vadd.xlane.f32.xlu0 %v1070
        %v1072 = vpop.xlane.xlu0 %1071
        %v1073 = vsel %vm927, %v1039, 0.0
        %1074 = vadd.xlane.f32.xlu0 %v1073
        %v1075 = vpop.xlane.xlu0 %1074
        %v1076 = vsel %vm927, %v1041, 0.0
        %1077 = vadd.xlane.f32.xlu0 %v1076
        %v1078 = vpop.xlane.xlu0 %1077
        %v1079 = vsel %vm927, %v1043, 0.0
        %1080 = vadd.xlane.f32.xlu0 %v1079
        %v1081 = vpop.xlane.xlu0 %1080
        %v1082 = vsel %vm927, %v1045, 0.0
        %1083 = vadd.xlane.f32.xlu0 %v1082
        %v1084 = vpop.xlane.xlu0 %1083
        %v1085 = vsel %vm927, %v1047, 0.0
        %1086 = vadd.xlane.f32.xlu0 %v1085
        %v1087 = vpop.xlane.xlu0 %1086
        %v1088 = vadd.f32 %v1056, %v1066
        %v1089 = vadd.f32 %v1057, %v1069
        %v1090 = vadd.f32 %v1058, %v1072
        %v1091 = vadd.f32 %v1059, %v1075
        %v1092 = vadd.f32 %v1060, %v1078
        %v1093 = vadd.f32 %v1061, %v1081
        %v1094 = vadd.f32 %v1062, %v1084
        %v1095 = vadd.f32 %v1063, %v1087
        %vm1096 = vcmask 7168
        %1097 = vst.msk [vmem:[#allocation3] sm:$0xff] %vm1096, %v1088
        %1098 = vst.msk [vmem:[#allocation3 + $0x8] sm:$0xff] %vm1096, %v1089
        %1099 = vst.msk [vmem:[#allocation3 + $0x10] sm:$0xff] %vm1096, %v1090
        %1100 = vst.msk [vmem:[#allocation3 + $0x18] sm:$0xff] %vm1096, %v1091
        %1101 = vst.msk [vmem:[#allocation3 + $0x20] sm:$0xff] %vm1096, %v1092
        %1102 = vst.msk [vmem:[#allocation3 + $0x28] sm:$0xff] %vm1096, %v1093
        %1103 = vst.msk [vmem:[#allocation3 + $0x30] sm:$0xff] %vm1096, %v1094
        %1104 = vst.msk [vmem:[#allocation3 + $0x38] sm:$0xff] %vm1096, %v1095
        %v1105 = vld [vmem:[#allocation4] sm:$0xff]
        %v1106 = vld [vmem:[#allocation4 + $0x8] sm:$0xff]
        %v1107 = vld [vmem:[#allocation4 + $0x10] sm:$0xff]
        %v1108 = vld [vmem:[#allocation4 + $0x18] sm:$0xff]
        %v1109 = vld [vmem:[#allocation4 + $0x20] sm:$0xff]
        %v1110 = vld [vmem:[#allocation4 + $0x28] sm:$0xff]
        %v1111 = vld [vmem:[#allocation4 + $0x30] sm:$0xff]
        %v1112 = vld [vmem:[#allocation4 + $0x38] sm:$0xff]
        %1114 = vset.pattern.permute.xlu0 0
        %1115 = vperm.xlu0 %1114, %v969
        %v1116 = vpop.permute.xlu0 %1115
        %1119 = vset.pattern.permute.xlu0 0
        %1120 = vperm.xlu0 %1119, %v971
        %v1121 = vpop.permute.xlu0 %1120
        %1124 = vset.pattern.permute.xlu0 0
        %1125 = vperm.xlu0 %1124, %v973
        %v1126 = vpop.permute.xlu0 %1125
        %1129 = vset.pattern.permute.xlu0 0
        %1130 = vperm.xlu0 %1129, %v975
        %v1131 = vpop.permute.xlu0 %1130
        %1134 = vset.pattern.permute.xlu0 0
        %1135 = vperm.xlu0 %1134, %v977
        %v1136 = vpop.permute.xlu0 %1135
        %1139 = vset.pattern.permute.xlu0 0
        %1140 = vperm.xlu0 %1139, %v979
        %v1141 = vpop.permute.xlu0 %1140
        %1144 = vset.pattern.permute.xlu0 0
        %1145 = vperm.xlu0 %1144, %v981
        %v1146 = vpop.permute.xlu0 %1145
        %1149 = vset.pattern.permute.xlu0 0
        %1150 = vperm.xlu0 %1149, %v983
        %v1151 = vpop.permute.xlu0 %1150
        %v1153 = vmul.f32 %v1116, %v1105
        %v1154 = vmul.f32 %v1121, %v1106
        %v1155 = vmul.f32 %v1126, %v1107
        %v1156 = vmul.f32 %v1131, %v1108
        %v1157 = vmul.f32 %v1136, %v1109
        %v1158 = vmul.f32 %v1141, %v1110
        %v1159 = vmul.f32 %v1146, %v1111
        %v1160 = vmul.f32 %v1151, %v1112
        %v1161 = vpack.c.bf16 %v1033, %v1033
        %v1162 = vpack.c.bf16 %v1035, %v1035
        %v1163 = vpack.c.bf16 %v1037, %v1037
        %v1164 = vpack.c.bf16 %v1039, %v1039
        %v1165 = vpack.c.bf16 %v1041, %v1041
        %v1166 = vpack.c.bf16 %v1043, %v1043
        %v1167 = vpack.c.bf16 %v1045, %v1045
        %v1168 = vpack.c.bf16 %v1047, %v1047
        %v1170 = vsel %vm927, %v1161, 0
        %vm1172 = vcmask 1043456
        %v1174 = vsel %vm1172, %v542, 0
        %1176 = vmatprep.subr.bf16.mxu0 0
        %1177 = vmatpush1.bf16.msra.mxu0 %v1174
        %1178 = vmatprep.subr.bf16.mxu0 0
        %1179 = vmatpush1.bf16.msra.mxu0 0
        %1180 = vmatprep.subr.bf16.mxu0 0
        %1181 = vmatpush1.bf16.msra.mxu0 0
        %1182 = vmatprep.subr.bf16.mxu0 0
        %1183 = vmatpush1.bf16.msra.mxu0 0
        %1184 = vmatprep.subr.bf16.mxu0 0
        %1185 = vmatpush1.bf16.msra.mxu0 0
        %1186 = vmatprep.subr.bf16.mxu0 0
        %1187 = vmatpush1.bf16.msra.mxu0 0
        %1188 = vmatprep.subr.bf16.mxu0 0
        %1189 = vmatpush1.bf16.msra.mxu0 0
        %1190 = vmatprep.subr.bf16.mxu0 0
        %1191 = vmatpush1.bf16.msra.mxu0 0
        %1192 = vmatprep.subr.bf16.mxu0 0
        %1193 = vmatpush1.bf16.msra.mxu0 0
        %1194 = vmatprep.subr.bf16.mxu0 0
        %1195 = vmatpush1.bf16.msra.mxu0 0
        %1196 = vmatprep.subr.bf16.mxu0 0
        %1197 = vmatpush1.bf16.msra.mxu0 0
        %1198 = vmatprep.subr.bf16.mxu0 0
        %1199 = vmatpush1.bf16.msra.mxu0 0
        %1200 = vmatprep.subr.bf16.mxu0 0
        %1201 = vmatpush1.bf16.msra.mxu0 0
        %1202 = vmatprep.subr.bf16.mxu0 0
        %1203 = vmatpush1.bf16.msra.mxu0 0
        %1204 = vmatprep.subr.bf16.mxu0 0
        %1205 = vmatpush1.bf16.msra.mxu0 0
        %1206 = vmatprep.subr.bf16.mxu0 0
        %1207 = vmatpush1.bf16.msra.mxu0 0
        %1208 = vmatprep.mubr.bf16.mxu0 0
        %1209 = vmatmul.mubr.bf16.gmra.mrb[0].mxu0 %v1170
        %v1210 = vpop.f32.mrb[0].mxu0
        %v1211 = vadd.f32 0.0, %v1210
        %v1212 = vpop.f32.mrb[0].mxu0
        %v1213 = vpop.f32.mrb[0].mxu0
        %v1214 = vpop.f32.mrb[0].mxu0
        %1215 = vdwg.mxu0
        %v1217 = vsel %vm927, %v1162, 0
        %v1220 = vsel %vm1172, %v543, 0
        %1222 = vmatprep.subr.bf16.mxu0 0
        %1223 = vmatpush1.bf16.msra.mxu0 %v1220
        %1224 = vmatprep.subr.bf16.mxu0 0
        %1225 = vmatpush1.bf16.msra.mxu0 0
        %1226 = vmatprep.subr.bf16.mxu0 0
        %1227 = vmatpush1.bf16.msra.mxu0 0
        %1228 = vmatprep.subr.bf16.mxu0 0
        %1229 = vmatpush1.bf16.msra.mxu0 0
        %1230 = vmatprep.subr.bf16.mxu0 0
        %1231 = vmatpush1.bf16.msra.mxu0 0
        %1232 = vmatprep.subr.bf16.mxu0 0
        %1233 = vmatpush1.bf16.msra.mxu0 0
        %1234 = vmatprep.subr.bf16.mxu0 0
        %1235 = vmatpush1.bf16.msra.mxu0 0
        %1236 = vmatprep.subr.bf16.mxu0 0
        %1237 = vmatpush1.bf16.msra.mxu0 0
        %1238 = vmatprep.subr.bf16.mxu0 0
        %1239 = vmatpush1.bf16.msra.mxu0 0
        %1240 = vmatprep.subr.bf16.mxu0 0
        %1241 = vmatpush1.bf16.msra.mxu0 0
        %1242 = vmatprep.subr.bf16.mxu0 0
        %1243 = vmatpush1.bf16.msra.mxu0 0
        %1244 = vmatprep.subr.bf16.mxu0 0
        %1245 = vmatpush1.bf16.msra.mxu0 0
        %1246 = vmatprep.subr.bf16.mxu0 0
        %1247 = vmatpush1.bf16.msra.mxu0 0
        %1248 = vmatprep.subr.bf16.mxu0 0
        %1249 = vmatpush1.bf16.msra.mxu0 0
        %1250 = vmatprep.subr.bf16.mxu0 0
        %1251 = vmatpush1.bf16.msra.mxu0 0
        %1252 = vmatprep.subr.bf16.mxu0 0
        %1253 = vmatpush1.bf16.msra.mxu0 0
        %1254 = vmatprep.mubr.bf16.mxu0 0
        %1255 = vmatmul.mubr.bf16.gmra.mrb[0].mxu0 %v1217
        %v1256 = vpop.f32.mrb[0].mxu0
        %v1257 = vadd.f32 0.0, %v1256
        %v1258 = vpop.f32.mrb[0].mxu0
        %v1259 = vpop.f32.mrb[0].mxu0
        %v1260 = vpop.f32.mrb[0].mxu0
        %1261 = vdwg.mxu0
        %v1263 = vsel %vm927, %v1163, 0
        %v1266 = vsel %vm1172, %v544, 0
        %1268 = vmatprep.subr.bf16.mxu0 0
        %1269 = vmatpush1.bf16.msra.mxu0 %v1266
        %1270 = vmatprep.subr.bf16.mxu0 0
        %1271 = vmatpush1.bf16.msra.mxu0 0
        %1272 = vmatprep.subr.bf16.mxu0 0
        %1273 = vmatpush1.bf16.msra.mxu0 0
        %1274 = vmatprep.subr.bf16.mxu0 0
        %1275 = vmatpush1.bf16.msra.mxu0 0
        %1276 = vmatprep.subr.bf16.mxu0 0
        %1277 = vmatpush1.bf16.msra.mxu0 0
        %1278 = vmatprep.subr.bf16.mxu0 0
        %1279 = vmatpush1.bf16.msra.mxu0 0
        %1280 = vmatprep.subr.bf16.mxu0 0
        %1281 = vmatpush1.bf16.msra.mxu0 0
        %1282 = vmatprep.subr.bf16.mxu0 0
        %1283 = vmatpush1.bf16.msra.mxu0 0
        %1284 = vmatprep.subr.bf16.mxu0 0
        %1285 = vmatpush1.bf16.msra.mxu0 0
        %1286 = vmatprep.subr.bf16.mxu0 0
        %1287 = vmatpush1.bf16.msra.mxu0 0
        %1288 = vmatprep.subr.bf16.mxu0 0
        %1289 = vmatpush1.bf16.msra.mxu0 0
        %1290 = vmatprep.subr.bf16.mxu0 0
        %1291 = vmatpush1.bf16.msra.mxu0 0
        %1292 = vmatprep.subr.bf16.mxu0 0
        %1293 = vmatpush1.bf16.msra.mxu0 0
        %1294 = vmatprep.subr.bf16.mxu0 0
        %1295 = vmatpush1.bf16.msra.mxu0 0
        %1296 = vmatprep.subr.bf16.mxu0 0
        %1297 = vmatpush1.bf16.msra.mxu0 0
        %1298 = vmatprep.subr.bf16.mxu0 0
        %1299 = vmatpush1.bf16.msra.mxu0 0
        %1300 = vmatprep.mubr.bf16.mxu0 0
        %1301 = vmatmul.mubr.bf16.gmra.mrb[0].mxu0 %v1263
        %v1302 = vpop.f32.mrb[0].mxu0
        %v1303 = vadd.f32 0.0, %v1302
        %v1304 = vpop.f32.mrb[0].mxu0
        %v1305 = vpop.f32.mrb[0].mxu0
        %v1306 = vpop.f32.mrb[0].mxu0
        %1307 = vdwg.mxu0
        %v1309 = vsel %vm927, %v1164, 0
        %v1312 = vsel %vm1172, %v545, 0
        %1314 = vmatprep.subr.bf16.mxu0 0
        %1315 = vmatpush1.bf16.msra.mxu0 %v1312
        %1316 = vmatprep.subr.bf16.mxu0 0
        %1317 = vmatpush1.bf16.msra.mxu0 0
        %1318 = vmatprep.subr.bf16.mxu0 0
        %1319 = vmatpush1.bf16.msra.mxu0 0
        %1320 = vmatprep.subr.bf16.mxu0 0
        %1321 = vmatpush1.bf16.msra.mxu0 0
        %1322 = vmatprep.subr.bf16.mxu0 0
        %1323 = vmatpush1.bf16.msra.mxu0 0
        %1324 = vmatprep.subr.bf16.mxu0 0
        %1325 = vmatpush1.bf16.msra.mxu0 0
        %1326 = vmatprep.subr.bf16.mxu0 0
        %1327 = vmatpush1.bf16.msra.mxu0 0
        %1328 = vmatprep.subr.bf16.mxu0 0
        %1329 = vmatpush1.bf16.msra.mxu0 0
        %1330 = vmatprep.subr.bf16.mxu0 0
        %1331 = vmatpush1.bf16.msra.mxu0 0
        %1332 = vmatprep.subr.bf16.mxu0 0
        %1333 = vmatpush1.bf16.msra.mxu0 0
        %1334 = vmatprep.subr.bf16.mxu0 0
        %1335 = vmatpush1.bf16.msra.mxu0 0
        %1336 = vmatprep.subr.bf16.mxu0 0
        %1337 = vmatpush1.bf16.msra.mxu0 0
        %1338 = vmatprep.subr.bf16.mxu0 0
        %1339 = vmatpush1.bf16.msra.mxu0 0
        %1340 = vmatprep.subr.bf16.mxu0 0
        %1341 = vmatpush1.bf16.msra.mxu0 0
        %1342 = vmatprep.subr.bf16.mxu0 0
        %1343 = vmatpush1.bf16.msra.mxu0 0
        %1344 = vmatprep.subr.bf16.mxu0 0
        %1345 = vmatpush1.bf16.msra.mxu0 0
        %1346 = vmatprep.mubr.bf16.mxu0 0
        %1347 = vmatmul.mubr.bf16.gmra.mrb[0].mxu0 %v1309
        %v1348 = vpop.f32.mrb[0].mxu0
        %v1349 = vadd.f32 0.0, %v1348
        %v1350 = vpop.f32.mrb[0].mxu0
        %v1351 = vpop.f32.mrb[0].mxu0
        %v1352 = vpop.f32.mrb[0].mxu0
        %1353 = vdwg.mxu0
        %v1355 = vsel %vm927, %v1165, 0
        %v1358 = vsel %vm1172, %v546, 0
        %1360 = vmatprep.subr.bf16.mxu0 0
        %1361 = vmatpush1.bf16.msra.mxu0 %v1358
        %1362 = vmatprep.subr.bf16.mxu0 0
        %1363 = vmatpush1.bf16.msra.mxu0 0
        %1364 = vmatprep.subr.bf16.mxu0 0
        %1365 = vmatpush1.bf16.msra.mxu0 0
        %1366 = vmatprep.subr.bf16.mxu0 0
        %1367 = vmatpush1.bf16.msra.mxu0 0
        %1368 = vmatprep.subr.bf16.mxu0 0
        %1369 = vmatpush1.bf16.msra.mxu0 0
        %1370 = vmatprep.subr.bf16.mxu0 0
        %1371 = vmatpush1.bf16.msra.mxu0 0
        %1372 = vmatprep.subr.bf16.mxu0 0
        %1373 = vmatpush1.bf16.msra.mxu0 0
        %1374 = vmatprep.subr.bf16.mxu0 0
        %1375 = vmatpush1.bf16.msra.mxu0 0
        %1376 = vmatprep.subr.bf16.mxu0 0
        %1377 = vmatpush1.bf16.msra.mxu0 0
        %1378 = vmatprep.subr.bf16.mxu0 0
        %1379 = vmatpush1.bf16.msra.mxu0 0
        %1380 = vmatprep.subr.bf16.mxu0 0
        %1381 = vmatpush1.bf16.msra.mxu0 0
        %1382 = vmatprep.subr.bf16.mxu0 0
        %1383 = vmatpush1.bf16.msra.mxu0 0
        %1384 = vmatprep.subr.bf16.mxu0 0
        %1385 = vmatpush1.bf16.msra.mxu0 0
        %1386 = vmatprep.subr.bf16.mxu0 0
        %1387 = vmatpush1.bf16.msra.mxu0 0
        %1388 = vmatprep.subr.bf16.mxu0 0
        %1389 = vmatpush1.bf16.msra.mxu0 0
        %1390 = vmatprep.subr.bf16.mxu0 0
        %1391 = vmatpush1.bf16.msra.mxu0 0
        %1392 = vmatprep.mubr.bf16.mxu0 0
        %1393 = vmatmul.mubr.bf16.gmra.mrb[0].mxu0 %v1355
        %v1394 = vpop.f32.mrb[0].mxu0
        %v1395 = vadd.f32 0.0, %v1394
        %v1396 = vpop.f32.mrb[0].mxu0
        %v1397 = vpop.f32.mrb[0].mxu0
        %v1398 = vpop.f32.mrb[0].mxu0
        %1399 = vdwg.mxu0
        %v1401 = vsel %vm927, %v1166, 0
        %v1404 = vsel %vm1172, %v547, 0
        %1406 = vmatprep.subr.bf16.mxu0 0
        %1407 = vmatpush1.bf16.msra.mxu0 %v1404
        %1408 = vmatprep.subr.bf16.mxu0 0
        %1409 = vmatpush1.bf16.msra.mxu0 0
        %1410 = vmatprep.subr.bf16.mxu0 0
        %1411 = vmatpush1.bf16.msra.mxu0 0
        %1412 = vmatprep.subr.bf16.mxu0 0
        %1413 = vmatpush1.bf16.msra.mxu0 0
        %1414 = vmatprep.subr.bf16.mxu0 0
        %1415 = vmatpush1.bf16.msra.mxu0 0
        %1416 = vmatprep.subr.bf16.mxu0 0
        %1417 = vmatpush1.bf16.msra.mxu0 0
        %1418 = vmatprep.subr.bf16.mxu0 0
        %1419 = vmatpush1.bf16.msra.mxu0 0
        %1420 = vmatprep.subr.bf16.mxu0 0
        %1421 = vmatpush1.bf16.msra.mxu0 0
        %1422 = vmatprep.subr.bf16.mxu0 0
        %1423 = vmatpush1.bf16.msra.mxu0 0
        %1424 = vmatprep.subr.bf16.mxu0 0
        %1425 = vmatpush1.bf16.msra.mxu0 0
        %1426 = vmatprep.subr.bf16.mxu0 0
        %1427 = vmatpush1.bf16.msra.mxu0 0
        %1428 = vmatprep.subr.bf16.mxu0 0
        %1429 = vmatpush1.bf16.msra.mxu0 0
        %1430 = vmatprep.subr.bf16.mxu0 0
        %1431 = vmatpush1.bf16.msra.mxu0 0
        %1432 = vmatprep.subr.bf16.mxu0 0
        %1433 = vmatpush1.bf16.msra.mxu0 0
        %1434 = vmatprep.subr.bf16.mxu0 0
        %1435 = vmatpush1.bf16.msra.mxu0 0
        %1436 = vmatprep.subr.bf16.mxu0 0
        %1437 = vmatpush1.bf16.msra.mxu0 0
        %1438 = vmatprep.mubr.bf16.mxu0 0
        %1439 = vmatmul.mubr.bf16.gmra.mrb[0].mxu0 %v1401
        %v1440 = vpop.f32.mrb[0].mxu0
        %v1441 = vadd.f32 0.0, %v1440
        %v1442 = vpop.f32.mrb[0].mxu0
        %v1443 = vpop.f32.mrb[0].mxu0
        %v1444 = vpop.f32.mrb[0].mxu0
        %1445 = vdwg.mxu0
        %v1447 = vsel %vm927, %v1167, 0
        %v1450 = vsel %vm1172, %v548, 0
        %1452 = vmatprep.subr.bf16.mxu0 0
        %1453 = vmatpush1.bf16.msra.mxu0 %v1450
        %1454 = vmatprep.subr.bf16.mxu0 0
        %1455 = vmatpush1.bf16.msra.mxu0 0
        %1456 = vmatprep.subr.bf16.mxu0 0
        %1457 = vmatpush1.bf16.msra.mxu0 0
        %1458 = vmatprep.subr.bf16.mxu0 0
        %1459 = vmatpush1.bf16.msra.mxu0 0
        %1460 = vmatprep.subr.bf16.mxu0 0
        %1461 = vmatpush1.bf16.msra.mxu0 0
        %1462 = vmatprep.subr.bf16.mxu0 0
        %1463 = vmatpush1.bf16.msra.mxu0 0
        %1464 = vmatprep.subr.bf16.mxu0 0
        %1465 = vmatpush1.bf16.msra.mxu0 0
        %1466 = vmatprep.subr.bf16.mxu0 0
        %1467 = vmatpush1.bf16.msra.mxu0 0
        %1468 = vmatprep.subr.bf16.mxu0 0
        %1469 = vmatpush1.bf16.msra.mxu0 0
        %1470 = vmatprep.subr.bf16.mxu0 0
        %1471 = vmatpush1.bf16.msra.mxu0 0
        %1472 = vmatprep.subr.bf16.mxu0 0
        %1473 = vmatpush1.bf16.msra.mxu0 0
        %1474 = vmatprep.subr.bf16.mxu0 0
        %1475 = vmatpush1.bf16.msra.mxu0 0
        %1476 = vmatprep.subr.bf16.mxu0 0
        %1477 = vmatpush1.bf16.msra.mxu0 0
        %1478 = vmatprep.subr.bf16.mxu0 0
        %1479 = vmatpush1.bf16.msra.mxu0 0
        %1480 = vmatprep.subr.bf16.mxu0 0
        %1481 = vmatpush1.bf16.msra.mxu0 0
        %1482 = vmatprep.subr.bf16.mxu0 0
        %1483 = vmatpush1.bf16.msra.mxu0 0
        %1484 = vmatprep.mubr.bf16.mxu0 0
        %1485 = vmatmul.mubr.bf16.gmra.mrb[0].mxu0 %v1447
        %v1486 = vpop.f32.mrb[0].mxu0
        %v1487 = vadd.f32 0.0, %v1486
        %v1488 = vpop.f32.mrb[0].mxu0
        %v1489 = vpop.f32.mrb[0].mxu0
        %v1490 = vpop.f32.mrb[0].mxu0
        %1491 = vdwg.mxu0
        %v1493 = vsel %vm927, %v1168, 0
        %v1496 = vsel %vm1172, %v549, 0
        %1498 = vmatprep.subr.bf16.mxu0 0
        %1499 = vmatpush1.bf16.msra.mxu0 %v1496
        %1500 = vmatprep.subr.bf16.mxu0 0
        %1501 = vmatpush1.bf16.msra.mxu0 0
        %1502 = vmatprep.subr.bf16.mxu0 0
        %1503 = vmatpush1.bf16.msra.mxu0 0
        %1504 = vmatprep.subr.bf16.mxu0 0
        %1505 = vmatpush1.bf16.msra.mxu0 0
        %1506 = vmatprep.subr.bf16.mxu0 0
        %1507 = vmatpush1.bf16.msra.mxu0 0
        %1508 = vmatprep.subr.bf16.mxu0 0
        %1509 = vmatpush1.bf16.msra.mxu0 0
        %1510 = vmatprep.subr.bf16.mxu0 0
        %1511 = vmatpush1.bf16.msra.mxu0 0
        %1512 = vmatprep.subr.bf16.mxu0 0
        %1513 = vmatpush1.bf16.msra.mxu0 0
        %1514 = vmatprep.subr.bf16.mxu0 0
        %1515 = vmatpush1.bf16.msra.mxu0 0
        %1516 = vmatprep.subr.bf16.mxu0 0
        %1517 = vmatpush1.bf16.msra.mxu0 0
        %1518 = vmatprep.subr.bf16.mxu0 0
        %1519 = vmatpush1.bf16.msra.mxu0 0
        %1520 = vmatprep.subr.bf16.mxu0 0
        %1521 = vmatpush1.bf16.msra.mxu0 0
        %1522 = vmatprep.subr.bf16.mxu0 0
        %1523 = vmatpush1.bf16.msra.mxu0 0
        %1524 = vmatprep.subr.bf16.mxu0 0
        %1525 = vmatpush1.bf16.msra.mxu0 0
        %1526 = vmatprep.subr.bf16.mxu0 0
        %1527 = vmatpush1.bf16.msra.mxu0 0
        %1528 = vmatprep.subr.bf16.mxu0 0
        %1529 = vmatpush1.bf16.msra.mxu0 0
        %1530 = vmatprep.mubr.bf16.mxu0 0
        %1531 = vmatmul.mubr.bf16.gmra.mrb[0].mxu0 %v1493
        %v1532 = vpop.f32.mrb[0].mxu0
        %v1533 = vadd.f32 0.0, %v1532
        %v1534 = vpop.f32.mrb[0].mxu0
        %v1535 = vpop.f32.mrb[0].mxu0
        %v1536 = vpop.f32.mrb[0].mxu0
        %1537 = vdwg.mxu0
        %v1538 = vadd.f32 %v1153, %v1211
        %v1539 = vadd.f32 %v1154, %v1257
        %v1540 = vadd.f32 %v1155, %v1303
        %v1541 = vadd.f32 %v1156, %v1349
        %v1542 = vadd.f32 %v1157, %v1395
        %v1543 = vadd.f32 %v1158, %v1441
        %v1544 = vadd.f32 %v1159, %v1487
        %v1545 = vadd.f32 %v1160, %v1533
        %1546 = vst.msk [vmem:[#allocation4] sm:$0xff] %vm550, %v1538
        %1547 = vst.msk [vmem:[#allocation4 + $0x8] sm:$0xff] %vm550, %v1539
        %1548 = vst.msk [vmem:[#allocation4 + $0x10] sm:$0xff] %vm550, %v1540
        %1549 = vst.msk [vmem:[#allocation4 + $0x18] sm:$0xff] %vm550, %v1541
        %1550 = vst.msk [vmem:[#allocation4 + $0x20] sm:$0xff] %vm550, %v1542
        %1551 = vst.msk [vmem:[#allocation4 + $0x28] sm:$0xff] %vm550, %v1543
        %1552 = vst.msk [vmem:[#allocation4 + $0x30] sm:$0xff] %vm550, %v1544
        %1553 = vst.msk [vmem:[#allocation4 + $0x38] sm:$0xff] %vm550, %v1545
        %1554 = vst.msk [vmem:[#allocation2] sm:$0xff] %vm1096, %v952
        %1555 = vst.msk [vmem:[#allocation2 + $0x8] sm:$0xff] %vm1096, %v953
        %1556 = vst.msk [vmem:[#allocation2 + $0x10] sm:$0xff] %vm1096, %v954
        %1557 = vst.msk [vmem:[#allocation2 + $0x18] sm:$0xff] %vm1096, %v955
        %1558 = vst.msk [vmem:[#allocation2 + $0x20] sm:$0xff] %vm1096, %v956
        %1559 = vst.msk [vmem:[#allocation2 + $0x28] sm:$0xff] %vm1096, %v957
        %1560 = vst.msk [vmem:[#allocation2 + $0x30] sm:$0xff] %vm1096, %v958
        %1561 = vst.msk [vmem:[#allocation2 + $0x38] sm:$0xff] %vm1096, %v959
        // Predicated region
        $region61: #{bag_of_attentions.3} parent=55 // pred_check
          %p1562 = pneg %p496
        $region62: #{bag_of_attentions.3} parent=55 // pred_check_branch
          %1564 = sbr.rel (%p1562) target = $region64
        $region63: #{bag_of_attentions.3} parent=55 // pred_region
          %v1565 = vld [vmem:[#allocation3] sm:$0xff]
          %v1566 = vld [vmem:[#allocation3 + $0x8] sm:$0xff]
          %v1567 = vld [vmem:[#allocation3 + $0x10] sm:$0xff]
          %v1568 = vld [vmem:[#allocation3 + $0x18] sm:$0xff]
          %v1569 = vld [vmem:[#allocation3 + $0x20] sm:$0xff]
          %v1570 = vld [vmem:[#allocation3 + $0x28] sm:$0xff]
          %v1571 = vld [vmem:[#allocation3 + $0x30] sm:$0xff]
          %v1572 = vld [vmem:[#allocation3 + $0x38] sm:$0xff]
          %v1573 = vrcp.pop %v1565
          %v1574 = vrcp.pop %v1566
          %v1575 = vrcp.pop %v1567
          %v1576 = vrcp.pop %v1568
          %v1577 = vrcp.pop %v1569
          %v1578 = vrcp.pop %v1570
          %v1579 = vrcp.pop %v1571
          %v1580 = vrcp.pop %v1572
          %v1581 = vld [vmem:[#allocation4] sm:$0xff]
          %v1582 = vld [vmem:[#allocation4 + $0x8] sm:$0xff]
          %v1583 = vld [vmem:[#allocation4 + $0x10] sm:$0xff]
          %v1584 = vld [vmem:[#allocation4 + $0x18] sm:$0xff]
          %v1585 = vld [vmem:[#allocation4 + $0x20] sm:$0xff]
          %v1586 = vld [vmem:[#allocation4 + $0x28] sm:$0xff]
          %v1587 = vld [vmem:[#allocation4 + $0x30] sm:$0xff]
          %v1588 = vld [vmem:[#allocation4 + $0x38] sm:$0xff]
          %1590 = vset.pattern.permute.xlu0 0
          %1591 = vperm.xlu0 %1590, %v1573
          %v1592 = vpop.permute.xlu0 %1591
          %1595 = vset.pattern.permute.xlu0 0
          %1596 = vperm.xlu0 %1595, %v1574
          %v1597 = vpop.permute.xlu0 %1596
          %1600 = vset.pattern.permute.xlu0 0
          %1601 = vperm.xlu0 %1600, %v1575
          %v1602 = vpop.permute.xlu0 %1601
          %1605 = vset.pattern.permute.xlu0 0
          %1606 = vperm.xlu0 %1605, %v1576
          %v1607 = vpop.permute.xlu0 %1606
          %1610 = vset.pattern.permute.xlu0 0
          %1611 = vperm.xlu0 %1610, %v1577
          %v1612 = vpop.permute.xlu0 %1611
          %1615 = vset.pattern.permute.xlu0 0
          %1616 = vperm.xlu0 %1615, %v1578
          %v1617 = vpop.permute.xlu0 %1616
          %1620 = vset.pattern.permute.xlu0 0
          %1621 = vperm.xlu0 %1620, %v1579
          %v1622 = vpop.permute.xlu0 %1621
          %1625 = vset.pattern.permute.xlu0 0
          %1626 = vperm.xlu0 %1625, %v1580
          %v1627 = vpop.permute.xlu0 %1626
          %v1629 = vmul.f32 %v1581, %v1592
          %v1630 = vmul.f32 %v1582, %v1597
          %v1631 = vmul.f32 %v1583, %v1602
          %v1632 = vmul.f32 %v1584, %v1607
          %v1633 = vmul.f32 %v1585, %v1612
          %v1634 = vmul.f32 %v1586, %v1617
          %v1635 = vmul.f32 %v1587, %v1622
          %v1636 = vmul.f32 %v1588, %v1627
          %v1637 = vpack.c.bf16 %v1629, %v1629
          %v1638 = vpack.c.bf16 %v1630, %v1630
          %v1639 = vpack.c.bf16 %v1631, %v1631
          %v1640 = vpack.c.bf16 %v1632, %v1632
          %v1641 = vpack.c.bf16 %v1633, %v1633
          %v1642 = vpack.c.bf16 %v1634, %v1634
          %v1643 = vpack.c.bf16 %v1635, %v1635
          %v1644 = vpack.c.bf16 %v1636, %v1636
          %v1645 = vld [vmem:[%s6] sm:$0x3]
          %v1646 = vld [vmem:[%s6 + $0x2] sm:$0x3]
          %v1647 = vld [vmem:[%s6 + $0x4] sm:$0x3]
          %v1648 = vld [vmem:[%s6 + $0x6] sm:$0x3]
          %v1649 = vld [vmem:[%s6 + $0x8] sm:$0x3]
          %v1650 = vld [vmem:[%s6 + $0xa] sm:$0x3]
          %v1651 = vld [vmem:[%s6 + $0xc] sm:$0x3]
          %v1652 = vld [vmem:[%s6 + $0xe] sm:$0x3]
          %v1654 = vsel %vm550, %v1637, 0
          %vm1656 = vcmask 1041408
          %v1658 = vsel %vm1656, %v1645, 0
          %1660 = vmatprep.subr.bf16.mxu0 0
          %1661 = vmatpush1.bf16.msra.mxu0 %v1658
          %1662 = vmatprep.subr.bf16.mxu0 0
          %1663 = vmatpush1.bf16.msra.mxu0 0
          %1664 = vmatprep.subr.bf16.mxu0 0
          %1665 = vmatpush1.bf16.msra.mxu0 0
          %1666 = vmatprep.subr.bf16.mxu0 0
          %1667 = vmatpush1.bf16.msra.mxu0 0
          %1668 = vmatprep.subr.bf16.mxu0 0
          %1669 = vmatpush1.bf16.msra.mxu0 0
          %1670 = vmatprep.subr.bf16.mxu0 0
          %1671 = vmatpush1.bf16.msra.mxu0 0
          %1672 = vmatprep.subr.bf16.mxu0 0
          %1673 = vmatpush1.bf16.msra.mxu0 0
          %1674 = vmatprep.subr.bf16.mxu0 0
          %1675 = vmatpush1.bf16.msra.mxu0 0
          %1676 = vmatprep.subr.bf16.mxu0 0
          %1677 = vmatpush1.bf16.msra.mxu0 0
          %1678 = vmatprep.subr.bf16.mxu0 0
          %1679 = vmatpush1.bf16.msra.mxu0 0
          %1680 = vmatprep.subr.bf16.mxu0 0
          %1681 = vmatpush1.bf16.msra.mxu0 0
          %1682 = vmatprep.subr.bf16.mxu0 0
          %1683 = vmatpush1.bf16.msra.mxu0 0
          %1684 = vmatprep.subr.bf16.mxu0 0
          %1685 = vmatpush1.bf16.msra.mxu0 0
          %1686 = vmatprep.subr.bf16.mxu0 0
          %1687 = vmatpush1.bf16.msra.mxu0 0
          %1688 = vmatprep.subr.bf16.mxu0 0
          %1689 = vmatpush1.bf16.msra.mxu0 0
          %1690 = vmatprep.subr.bf16.mxu0 0
          %1691 = vmatpush1.bf16.msra.mxu0 0
          %1692 = vmatprep.mubr.bf16.mxu0 0
          %1693 = vmatmul.mubr.bf16.gmra.mrb[0].mxu0 %v1654
          %v1694 = vpop.f32.mrb[0].mxu0
          %v1695 = vadd.f32 0.0, %v1694
          %v1696 = vpop.f32.mrb[0].mxu0
          %v1697 = vpop.f32.mrb[0].mxu0
          %v1698 = vpop.f32.mrb[0].mxu0
          %1699 = vdwg.mxu0
          %v1701 = vsel %vm550, %v1638, 0
          %v1704 = vsel %vm1656, %v1646, 0
          %1706 = vmatprep.subr.bf16.mxu0 0
          %1707 = vmatpush1.bf16.msra.mxu0 %v1704
          %1708 = vmatprep.subr.bf16.mxu0 0
          %1709 = vmatpush1.bf16.msra.mxu0 0
          %1710 = vmatprep.subr.bf16.mxu0 0
          %1711 = vmatpush1.bf16.msra.mxu0 0
          %1712 = vmatprep.subr.bf16.mxu0 0
          %1713 = vmatpush1.bf16.msra.mxu0 0
          %1714 = vmatprep.subr.bf16.mxu0 0
          %1715 = vmatpush1.bf16.msra.mxu0 0
          %1716 = vmatprep.subr.bf16.mxu0 0
          %1717 = vmatpush1.bf16.msra.mxu0 0
          %1718 = vmatprep.subr.bf16.mxu0 0
          %1719 = vmatpush1.bf16.msra.mxu0 0
          %1720 = vmatprep.subr.bf16.mxu0 0
          %1721 = vmatpush1.bf16.msra.mxu0 0
          %1722 = vmatprep.subr.bf16.mxu0 0
          %1723 = vmatpush1.bf16.msra.mxu0 0
          %1724 = vmatprep.subr.bf16.mxu0 0
          %1725 = vmatpush1.bf16.msra.mxu0 0
          %1726 = vmatprep.subr.bf16.mxu0 0
          %1727 = vmatpush1.bf16.msra.mxu0 0
          %1728 = vmatprep.subr.bf16.mxu0 0
          %1729 = vmatpush1.bf16.msra.mxu0 0
          %1730 = vmatprep.subr.bf16.mxu0 0
          %1731 = vmatpush1.bf16.msra.mxu0 0
          %1732 = vmatprep.subr.bf16.mxu0 0
          %1733 = vmatpush1.bf16.msra.mxu0 0
          %1734 = vmatprep.subr.bf16.mxu0 0
          %1735 = vmatpush1.bf16.msra.mxu0 0
          %1736 = vmatprep.subr.bf16.mxu0 0
          %1737 = vmatpush1.bf16.msra.mxu0 0
          %1738 = vmatprep.mubr.bf16.mxu0 0
          %1739 = vmatmul.mubr.bf16.gmra.mrb[0].mxu0 %v1701
          %v1740 = vpop.f32.mrb[0].mxu0
          %v1741 = vadd.f32 0.0, %v1740
          %v1742 = vpop.f32.mrb[0].mxu0
          %v1743 = vpop.f32.mrb[0].mxu0
          %v1744 = vpop.f32.mrb[0].mxu0
          %1745 = vdwg.mxu0
          %v1747 = vsel %vm550, %v1639, 0
          %v1750 = vsel %vm1656, %v1647, 0
          %1752 = vmatprep.subr.bf16.mxu0 0
          %1753 = vmatpush1.bf16.msra.mxu0 %v1750
          %1754 = vmatprep.subr.bf16.mxu0 0
          %1755 = vmatpush1.bf16.msra.mxu0 0
          %1756 = vmatprep.subr.bf16.mxu0 0
          %1757 = vmatpush1.bf16.msra.mxu0 0
          %1758 = vmatprep.subr.bf16.mxu0 0
          %1759 = vmatpush1.bf16.msra.mxu0 0
          %1760 = vmatprep.subr.bf16.mxu0 0
          %1761 = vmatpush1.bf16.msra.mxu0 0
          %1762 = vmatprep.subr.bf16.mxu0 0
          %1763 = vmatpush1.bf16.msra.mxu0 0
          %1764 = vmatprep.subr.bf16.mxu0 0
          %1765 = vmatpush1.bf16.msra.mxu0 0
          %1766 = vmatprep.subr.bf16.mxu0 0
          %1767 = vmatpush1.bf16.msra.mxu0 0
          %1768 = vmatprep.subr.bf16.mxu0 0
          %1769 = vmatpush1.bf16.msra.mxu0 0
          %1770 = vmatprep.subr.bf16.mxu0 0
          %1771 = vmatpush1.bf16.msra.mxu0 0
          %1772 = vmatprep.subr.bf16.mxu0 0
          %1773 = vmatpush1.bf16.msra.mxu0 0
          %1774 = vmatprep.subr.bf16.mxu0 0
          %1775 = vmatpush1.bf16.msra.mxu0 0
          %1776 = vmatprep.subr.bf16.mxu0 0
          %1777 = vmatpush1.bf16.msra.mxu0 0
          %1778 = vmatprep.subr.bf16.mxu0 0
          %1779 = vmatpush1.bf16.msra.mxu0 0
          %1780 = vmatprep.subr.bf16.mxu0 0
          %1781 = vmatpush1.bf16.msra.mxu0 0
          %1782 = vmatprep.subr.bf16.mxu0 0
          %1783 = vmatpush1.bf16.msra.mxu0 0
          %1784 = vmatprep.mubr.bf16.mxu0 0
          %1785 = vmatmul.mubr.bf16.gmra.mrb[0].mxu0 %v1747
          %v1786 = vpop.f32.mrb[0].mxu0
          %v1787 = vadd.f32 0.0, %v1786
          %v1788 = vpop.f32.mrb[0].mxu0
          %v1789 = vpop.f32.mrb[0].mxu0
          %v1790 = vpop.f32.mrb[0].mxu0
          %1791 = vdwg.mxu0
          %v1793 = vsel %vm550, %v1640, 0
          %v1796 = vsel %vm1656, %v1648, 0
          %1798 = vmatprep.subr.bf16.mxu0 0
          %1799 = vmatpush1.bf16.msra.mxu0 %v1796
          %1800 = vmatprep.subr.bf16.mxu0 0
          %1801 = vmatpush1.bf16.msra.mxu0 0
          %1802 = vmatprep.subr.bf16.mxu0 0
          %1803 = vmatpush1.bf16.msra.mxu0 0
          %1804 = vmatprep.subr.bf16.mxu0 0
          %1805 = vmatpush1.bf16.msra.mxu0 0
          %1806 = vmatprep.subr.bf16.mxu0 0
          %1807 = vmatpush1.bf16.msra.mxu0 0
          %1808 = vmatprep.subr.bf16.mxu0 0
          %1809 = vmatpush1.bf16.msra.mxu0 0
          %1810 = vmatprep.subr.bf16.mxu0 0
          %1811 = vmatpush1.bf16.msra.mxu0 0
          %1812 = vmatprep.subr.bf16.mxu0 0
          %1813 = vmatpush1.bf16.msra.mxu0 0
          %1814 = vmatprep.subr.bf16.mxu0 0
          %1815 = vmatpush1.bf16.msra.mxu0 0
          %1816 = vmatprep.subr.bf16.mxu0 0
          %1817 = vmatpush1.bf16.msra.mxu0 0
          %1818 = vmatprep.subr.bf16.mxu0 0
          %1819 = vmatpush1.bf16.msra.mxu0 0
          %1820 = vmatprep.subr.bf16.mxu0 0
          %1821 = vmatpush1.bf16.msra.mxu0 0
          %1822 = vmatprep.subr.bf16.mxu0 0
          %1823 = vmatpush1.bf16.msra.mxu0 0
          %1824 = vmatprep.subr.bf16.mxu0 0
          %1825 = vmatpush1.bf16.msra.mxu0 0
          %1826 = vmatprep.subr.bf16.mxu0 0
          %1827 = vmatpush1.bf16.msra.mxu0 0
          %1828 = vmatprep.subr.bf16.mxu0 0
          %1829 = vmatpush1.bf16.msra.mxu0 0
          %1830 = vmatprep.mubr.bf16.mxu0 0
          %1831 = vmatmul.mubr.bf16.gmra.mrb[0].mxu0 %v1793
          %v1832 = vpop.f32.mrb[0].mxu0
          %v1833 = vadd.f32 0.0, %v1832
          %v1834 = vpop.f32.mrb[0].mxu0
          %v1835 = vpop.f32.mrb[0].mxu0
          %v1836 = vpop.f32.mrb[0].mxu0
          %1837 = vdwg.mxu0
          %v1839 = vsel %vm550, %v1641, 0
          %v1842 = vsel %vm1656, %v1649, 0
          %1844 = vmatprep.subr.bf16.mxu0 0
          %1845 = vmatpush1.bf16.msra.mxu0 %v1842
          %1846 = vmatprep.subr.bf16.mxu0 0
          %1847 = vmatpush1.bf16.msra.mxu0 0
          %1848 = vmatprep.subr.bf16.mxu0 0
          %1849 = vmatpush1.bf16.msra.mxu0 0
          %1850 = vmatprep.subr.bf16.mxu0 0
          %1851 = vmatpush1.bf16.msra.mxu0 0
          %1852 = vmatprep.subr.bf16.mxu0 0
          %1853 = vmatpush1.bf16.msra.mxu0 0
          %1854 = vmatprep.subr.bf16.mxu0 0
          %1855 = vmatpush1.bf16.msra.mxu0 0
          %1856 = vmatprep.subr.bf16.mxu0 0
          %1857 = vmatpush1.bf16.msra.mxu0 0
          %1858 = vmatprep.subr.bf16.mxu0 0
          %1859 = vmatpush1.bf16.msra.mxu0 0
          %1860 = vmatprep.subr.bf16.mxu0 0
          %1861 = vmatpush1.bf16.msra.mxu0 0
          %1862 = vmatprep.subr.bf16.mxu0 0
          %1863 = vmatpush1.bf16.msra.mxu0 0
          %1864 = vmatprep.subr.bf16.mxu0 0
          %1865 = vmatpush1.bf16.msra.mxu0 0
          %1866 = vmatprep.subr.bf16.mxu0 0
          %1867 = vmatpush1.bf16.msra.mxu0 0
          %1868 = vmatprep.subr.bf16.mxu0 0
          %1869 = vmatpush1.bf16.msra.mxu0 0
          %1870 = vmatprep.subr.bf16.mxu0 0
          %1871 = vmatpush1.bf16.msra.mxu0 0
          %1872 = vmatprep.subr.bf16.mxu0 0
          %1873 = vmatpush1.bf16.msra.mxu0 0
          %1874 = vmatprep.subr.bf16.mxu0 0
          %1875 = vmatpush1.bf16.msra.mxu0 0
          %1876 = vmatprep.mubr.bf16.mxu0 0
          %1877 = vmatmul.mubr.bf16.gmra.mrb[0].mxu0 %v1839
          %v1878 = vpop.f32.mrb[0].mxu0
          %v1879 = vadd.f32 0.0, %v1878
          %v1880 = vpop.f32.mrb[0].mxu0
          %v1881 = vpop.f32.mrb[0].mxu0
          %v1882 = vpop.f32.mrb[0].mxu0
          %1883 = vdwg.mxu0
          %v1885 = vsel %vm550, %v1642, 0
          %v1888 = vsel %vm1656, %v1650, 0
          %1890 = vmatprep.subr.bf16.mxu0 0
          %1891 = vmatpush1.bf16.msra.mxu0 %v1888
          %1892 = vmatprep.subr.bf16.mxu0 0
          %1893 = vmatpush1.bf16.msra.mxu0 0
          %1894 = vmatprep.subr.bf16.mxu0 0
          %1895 = vmatpush1.bf16.msra.mxu0 0
          %1896 = vmatprep.subr.bf16.mxu0 0
          %1897 = vmatpush1.bf16.msra.mxu0 0
          %1898 = vmatprep.subr.bf16.mxu0 0
          %1899 = vmatpush1.bf16.msra.mxu0 0
          %1900 = vmatprep.subr.bf16.mxu0 0
          %1901 = vmatpush1.bf16.msra.mxu0 0
          %1902 = vmatprep.subr.bf16.mxu0 0
          %1903 = vmatpush1.bf16.msra.mxu0 0
          %1904 = vmatprep.subr.bf16.mxu0 0
          %1905 = vmatpush1.bf16.msra.mxu0 0
          %1906 = vmatprep.subr.bf16.mxu0 0
          %1907 = vmatpush1.bf16.msra.mxu0 0
          %1908 = vmatprep.subr.bf16.mxu0 0
          %1909 = vmatpush1.bf16.msra.mxu0 0
          %1910 = vmatprep.subr.bf16.mxu0 0
          %1911 = vmatpush1.bf16.msra.mxu0 0
          %1912 = vmatprep.subr.bf16.mxu0 0
          %1913 = vmatpush1.bf16.msra.mxu0 0
          %1914 = vmatprep.subr.bf16.mxu0 0
          %1915 = vmatpush1.bf16.msra.mxu0 0
          %1916 = vmatprep.subr.bf16.mxu0 0
          %1917 = vmatpush1.bf16.msra.mxu0 0
          %1918 = vmatprep.subr.bf16.mxu0 0
          %1919 = vmatpush1.bf16.msra.mxu0 0
          %1920 = vmatprep.subr.bf16.mxu0 0
          %1921 = vmatpush1.bf16.msra.mxu0 0
          %1922 = vmatprep.mubr.bf16.mxu0 0
          %1923 = vmatmul.mubr.bf16.gmra.mrb[0].mxu0 %v1885
          %v1924 = vpop.f32.mrb[0].mxu0
          %v1925 = vadd.f32 0.0, %v1924
          %v1926 = vpop.f32.mrb[0].mxu0
          %v1927 = vpop.f32.mrb[0].mxu0
          %v1928 = vpop.f32.mrb[0].mxu0
          %1929 = vdwg.mxu0
          %v1931 = vsel %vm550, %v1643, 0
          %v1934 = vsel %vm1656, %v1651, 0
          %1936 = vmatprep.subr.bf16.mxu0 0
          %1937 = vmatpush1.bf16.msra.mxu0 %v1934
          %1938 = vmatprep.subr.bf16.mxu0 0
          %1939 = vmatpush1.bf16.msra.mxu0 0
          %1940 = vmatprep.subr.bf16.mxu0 0
          %1941 = vmatpush1.bf16.msra.mxu0 0
          %1942 = vmatprep.subr.bf16.mxu0 0
          %1943 = vmatpush1.bf16.msra.mxu0 0
          %1944 = vmatprep.subr.bf16.mxu0 0
          %1945 = vmatpush1.bf16.msra.mxu0 0
          %1946 = vmatprep.subr.bf16.mxu0 0
          %1947 = vmatpush1.bf16.msra.mxu0 0
          %1948 = vmatprep.subr.bf16.mxu0 0
          %1949 = vmatpush1.bf16.msra.mxu0 0
          %1950 = vmatprep.subr.bf16.mxu0 0
          %1951 = vmatpush1.bf16.msra.mxu0 0
          %1952 = vmatprep.subr.bf16.mxu0 0
          %1953 = vmatpush1.bf16.msra.mxu0 0
          %1954 = vmatprep.subr.bf16.mxu0 0
          %1955 = vmatpush1.bf16.msra.mxu0 0
          %1956 = vmatprep.subr.bf16.mxu0 0
          %1957 = vmatpush1.bf16.msra.mxu0 0
          %1958 = vmatprep.subr.bf16.mxu0 0
          %1959 = vmatpush1.bf16.msra.mxu0 0
          %1960 = vmatprep.subr.bf16.mxu0 0
          %1961 = vmatpush1.bf16.msra.mxu0 0
          %1962 = vmatprep.subr.bf16.mxu0 0
          %1963 = vmatpush1.bf16.msra.mxu0 0
          %1964 = vmatprep.subr.bf16.mxu0 0
          %1965 = vmatpush1.bf16.msra.mxu0 0
          %1966 = vmatprep.subr.bf16.mxu0 0
          %1967 = vmatpush1.bf16.msra.mxu0 0
          %1968 = vmatprep.mubr.bf16.mxu0 0
          %1969 = vmatmul.mubr.bf16.gmra.mrb[0].mxu0 %v1931
          %v1970 = vpop.f32.mrb[0].mxu0
          %v1971 = vadd.f32 0.0, %v1970
          %v1972 = vpop.f32.mrb[0].mxu0
          %v1973 = vpop.f32.mrb[0].mxu0
          %v1974 = vpop.f32.mrb[0].mxu0
          %1975 = vdwg.mxu0
          %v1977 = vsel %vm550, %v1644, 0
          %v1980 = vsel %vm1656, %v1652, 0
          %1982 = vmatprep.subr.bf16.mxu0 0
          %1983 = vmatpush1.bf16.msra.mxu0 %v1980
          %1984 = vmatprep.subr.bf16.mxu0 0
          %1985 = vmatpush1.bf16.msra.mxu0 0
          %1986 = vmatprep.subr.bf16.mxu0 0
          %1987 = vmatpush1.bf16.msra.mxu0 0
          %1988 = vmatprep.subr.bf16.mxu0 0
          %1989 = vmatpush1.bf16.msra.mxu0 0
          %1990 = vmatprep.subr.bf16.mxu0 0
          %1991 = vmatpush1.bf16.msra.mxu0 0
          %1992 = vmatprep.subr.bf16.mxu0 0
          %1993 = vmatpush1.bf16.msra.mxu0 0
          %1994 = vmatprep.subr.bf16.mxu0 0
          %1995 = vmatpush1.bf16.msra.mxu0 0
          %1996 = vmatprep.subr.bf16.mxu0 0
          %1997 = vmatpush1.bf16.msra.mxu0 0
          %1998 = vmatprep.subr.bf16.mxu0 0
          %1999 = vmatpush1.bf16.msra.mxu0 0
          %2000 = vmatprep.subr.bf16.mxu0 0
          %2001 = vmatpush1.bf16.msra.mxu0 0
          %2002 = vmatprep.subr.bf16.mxu0 0
          %2003 = vmatpush1.bf16.msra.mxu0 0
          %2004 = vmatprep.subr.bf16.mxu0 0
          %2005 = vmatpush1.bf16.msra.mxu0 0
          %2006 = vmatprep.subr.bf16.mxu0 0
          %2007 = vmatpush1.bf16.msra.mxu0 0
          %2008 = vmatprep.subr.bf16.mxu0 0
          %2009 = vmatpush1.bf16.msra.mxu0 0
          %2010 = vmatprep.subr.bf16.mxu0 0
          %2011 = vmatpush1.bf16.msra.mxu0 0
          %2012 = vmatprep.subr.bf16.mxu0 0
          %2013 = vmatpush1.bf16.msra.mxu0 0
          %2014 = vmatprep.mubr.bf16.mxu0 0
          %2015 = vmatmul.mubr.bf16.gmra.mrb[0].mxu0 %v1977
          %v2016 = vpop.f32.mrb[0].mxu0
          %v2017 = vadd.f32 0.0, %v2016
          %v2018 = vpop.f32.mrb[0].mxu0
          %v2019 = vpop.f32.mrb[0].mxu0
          %v2020 = vpop.f32.mrb[0].mxu0
          %2021 = vdwg.mxu0
          %vm2022 = vcmask 261120
          %v2023 = vsel %vm2022, %v1695, 0.0
          %v2024 = vsel %vm2022, %v1741, 0.0
          %v2025 = vadd.f32 %v2023, %v2024
          %v2026 = vsel %vm2022, %v1787, 0.0
          %v2027 = vadd.f32 %v2025, %v2026
          %v2028 = vsel %vm2022, %v1833, 0.0
          %v2029 = vadd.f32 %v2027, %v2028
          %v2030 = vsel %vm2022, %v1879, 0.0
          %v2031 = vadd.f32 %v2029, %v2030
          %v2032 = vsel %vm2022, %v1925, 0.0
          %v2033 = vadd.f32 %v2031, %v2032
          %v2034 = vsel %vm2022, %v1971, 0.0
          %v2035 = vadd.f32 %v2033, %v2034
          %v2036 = vsel %vm2022, %v2017, 0.0
          %v2037 = vadd.f32 %v2035, %v2036
          %v2038 = vld [vmem:[%s484] sm:$0xf]
          %v2039 = vunpack.c.l.bf16 %v2038
          %v2040 = vld [vmem:[%s487] sm:$0x1]
          %v2041 = vld [vmem:[%s494] sm:$0xff]
          %v2043 = vlaneseq
          %v2044 = vshrl.u32 %v2043, 7
          %v2045 = vsub.s32 0, %v2044
          %v2046 = vrot.slane %v2040, %v2045
          %2049 = vset.pattern.permute.xlu0 0
          %2050 = vperm.xlu0 %2049, %v2041
          %v2051 = vpop.permute.xlu0 %2050
          %v2053 = vadd.f32 %v2046, %v2051
          %v2054 = vmul.f32 %v2039, %v2053
          %v2055 = vpack.c.bf16 %v2054, %v2054
          %v2056 = vld [vmem:[%s7] sm:$0xf]
          %v2057 = vld [vmem:[%s7 + $0x4] sm:$0xf]
          %v2058 = vld [vmem:[%s7 + $0x8] sm:$0xf]
          %v2059 = vld [vmem:[%s7 + $0xc] sm:$0xf]
          %v2064 = vunpack.c.l.b16 %v2056
          %v2065 = vunpack.c.l.b16 %v2057
          %v2066 = vunpack.c.l.b16 %v2058
          %v2067 = vunpack.c.l.b16 %v2059
          %v2068 = vpack.c.b16 %v2065, %v2064
          %v2069 = vpack.c.b16 %v2067, %v2066
          %v2073 = vsel %vm2022, %v2055, 0
          %2075 = vmatprep.subr.bf16.mxu0 0
          %2076 = vmatpush1.bf16.msra.mxu0 %v2068
          %2077 = vmatprep.subr.bf16.mxu0 0
          %2078 = vmatpush1.bf16.msra.mxu0 %v2069
          %2079 = vmatprep.subr.bf16.mxu0 0
          %2080 = vmatpush1.bf16.msra.mxu0 0
          %2081 = vmatprep.subr.bf16.mxu0 0
          %2082 = vmatpush1.bf16.msra.mxu0 0
          %2083 = vmatprep.subr.bf16.mxu0 0
          %2084 = vmatpush1.bf16.msra.mxu0 0
          %2085 = vmatprep.subr.bf16.mxu0 0
          %2086 = vmatpush1.bf16.msra.mxu0 0
          %2087 = vmatprep.subr.bf16.mxu0 0
          %2088 = vmatpush1.bf16.msra.mxu0 0
          %2089 = vmatprep.subr.bf16.mxu0 0
          %2090 = vmatpush1.bf16.msra.mxu0 0
          %2091 = vmatprep.subr.bf16.mxu0 0
          %2092 = vmatpush1.bf16.msra.mxu0 0
          %2093 = vmatprep.subr.bf16.mxu0 0
          %2094 = vmatpush1.bf16.msra.mxu0 0
          %2095 = vmatprep.subr.bf16.mxu0 0
          %2096 = vmatpush1.bf16.msra.mxu0 0
          %2097 = vmatprep.subr.bf16.mxu0 0
          %2098 = vmatpush1.bf16.msra.mxu0 0
          %2099 = vmatprep.subr.bf16.mxu0 0
          %2100 = vmatpush1.bf16.msra.mxu0 0
          %2101 = vmatprep.subr.bf16.mxu0 0
          %2102 = vmatpush1.bf16.msra.mxu0 0
          %2103 = vmatprep.subr.bf16.mxu0 0
          %2104 = vmatpush1.bf16.msra.mxu0 0
          %2105 = vmatprep.subr.bf16.mxu0 0
          %2106 = vmatpush1.bf16.msra.mxu0 0
          %2107 = vmatprep.mubr.bf16.mxu0 0
          %2108 = vmatmul.mubr.bf16.gmra.mrb[0].mxu0 %v2073
          %v2109 = vpop.f32.mrb[0].mxu0
          %v2110 = vadd.f32 0.0, %v2109
          %v2111 = vpop.f32.mrb[0].mxu0
          %v2112 = vpop.f32.mrb[0].mxu0
          %v2113 = vpop.f32.mrb[0].mxu0
          %2114 = vdwg.mxu0
          %v2115 = vadd.f32 %v2037, %v2110
          %v2116 = vld [vmem:[%s8] sm:$0x1]
          %v2118 = vlaneseq
          %v2119 = vshrl.u32 %v2118, 7
          %v2120 = vsub.s32 0, %v2119
          %v2121 = vrot.slane %v2116, %v2120
          %v2123 = vadd.f32 %v2115, %v2121
          %2124 = vst.msk [vmem:[%s453] sm:$0xff] %vm2022, %v2123
        $region64: #{bag_of_attentions.3} parent=55 // pred_fallthru
          _
        %s2125 = sand.u32 %s281, 1
        %s2126 = scalar_lea.sflag [#allocation6], %s2125
        %s2127 = sand.u32 %s281, 1
        %s2128 = smul.addr %s2127, 8
        %s2129 = scalar_lea.vmem [#allocation5], %s2128
        // Predicated region
        $region65: #{bag_of_attentions.3} parent=55 // pred_check
          %p2130 = pneg %p291
        $region66: #{bag_of_attentions.3} parent=55 // pred_check_branch
          %2132 = sbr.rel (%p2130) target = $region68
        $region67: #{bag_of_attentions.3} parent=55 // pred_region
          %s2134 = ssub.s32 128, 128
          %2135 = vsyncadd %s2126, %s2134
          %s2136 = sadd.s32 %s29, %s28
          %s2137 = smul.addr %s2136, 128
          %s2138 = scalar_lea.hbm %s9, %s2137
          %s2140 = sshll.u32 %s2129, 4
          %s2141 = int_to_ptr.vmem [resolvable:$true] %s2140
          %2143 = dma.vmem_to_hbm [thread:$0]  %s2141, 128, %s2138, %s2126
        $region68: #{bag_of_attentions.3} parent=55 // pred_fallthru
          _
      $region56: #{bag_of_attentions.3} parent=5 // pred_fallthru
        _
      %p2144 = scmp.le.s32.totalorder 2, %s18
      // Predicated region
      $region69: #{bag_of_attentions.3} parent=5 // pred_check
        %p2145 = pneg %p2144
      $region70: #{bag_of_attentions.3} parent=5 // pred_check_branch
        %2147 = sbr.rel (%p2145) target = $region72
      $region71: #{bag_of_attentions.3} parent=5 // pred_region
        %s2148 = ssub.s32 %s18, 2
        // Predicated region
        $region73: #{bag_of_attentions.3} parent=71 // pred_check
          %p2149 = pneg %p297
        $region74: #{bag_of_attentions.3} parent=71 // pred_check_branch
          %2151 = sbr.rel (%p2149) target = $region76
        $region75: #{bag_of_attentions.3} parent=71 // pred_region
          %s2152 = sand.u32 %s282, 1
          %s2153 = scalar_lea.sflag [#allocation6], %s2152
          %s2154 = sand.u32 %s282, 1
          %s2155 = smul.addr %s2154, 8
          %s2156 = scalar_lea.vmem [#allocation5], %s2155
          %2157 = dma.done %s2153, 128
        $region76: #{bag_of_attentions.3} parent=71 // pred_fallthru
          _
      $region72: #{bag_of_attentions.3} parent=5 // pred_fallthru
        _
    $region6: #{bag_of_attentions.3} parent=1 // loop_footer
      %s22 = sadd.s32 1, %s18
    $region7: #{bag_of_attentions.3} parent=1 // loop_footer_branch
      %17 = sbr.rel target = $region3
    $region8: #{bag_of_attentions.3} parent=1 // loop_exit
      _
    %2158 = vsyncpa [#allocation6], 1
    %s2159 = scalar_lea.sflag [#allocation6], 1
    %2160 = vsyncpa %s2159, 1

</llo_original>
